<compile_context>
chip_gen: v7x
topology: tpu7x:2x2x1
jax: 0.10.0
libtpu: 0.0.40
codegen_flags: <defaults>
</compile_context>

<pallas_src>
import functools

import jax
import jax.numpy as jnp
from jax.experimental import pallas as pl
from jax.experimental.pallas import tpu as pltpu


_HP = 128       # hidden_dim padded to one 128-lane vreg block
_MAX_TB = 1024  # max batch-tile rows (review: 512-2048 is the sweet spot)


def _round_up(x, m):
    return (x + m - 1) // m * m


def _vae_kernel(x_ref, w1_ref, b1_ref, w23_ref, b23_ref, noise_ref, out_ref,
                *, hidden_dim):
    # linear1 + relu.  x arrives as f32 straight from HBM and is cast to bf16
    # here (no extra wrapper-side HBM pass); MXU accumulates in f32 and the
    # whole epilogue stays f32 (v5e has no bf16 VPU/EUP path).
    x = x_ref[...].astype(jnp.bfloat16)
    h = jnp.dot(x, w1_ref[...], preferred_element_type=jnp.float32)
    h = jnp.maximum(h + b1_ref[...], 0.0)

    # Fused linear2|linear3: one MXU pass over the concatenated [512, 2*128]
    # weight whose halves are each padded to a 128-lane boundary, so the split
    # below is exactly at a vreg boundary (zero cross-lane movement).
    mulog = jnp.dot(h.astype(jnp.bfloat16), w23_ref[...],
                    preferred_element_type=jnp.float32) + b23_ref[...]
    hp = noise_ref.shape[1]                      # = _HP
    mu = mulog[:, :hp]
    log_sigma = mulog[:, hp:]
    sigma = jnp.exp(log_sigma)

    # Reparameterization on the full padded lane width (padded noise lanes are
    # zero, so padded hidden lanes come out exactly zero).
    hidden = mu + noise_ref[...] * sigma

    # Per-row KL over the *valid* lanes only.  Padded lanes have mu=0,
    # log_sigma=0, sigma=1 and would each contribute a spurious +0.5.
    lane = jax.lax.broadcasted_iota(jnp.int32, hidden.shape, 1)
    kl_terms = jnp.where(lane < hidden_dim,
                         sigma * sigma + mu * mu - log_sigma - 0.5,
                         0.0)
    kl_row = jnp.sum(kl_terms, axis=1, keepdims=True)        # [TB, 1]

    # Single lane-dense store: hidden in lanes [:H], per-row KL in lane H.
    out_ref[...] = jnp.where(lane == hidden_dim, kl_row, hidden)


def _vae_encoder_pallas(x_nchw, params, noise):
    w1, b1, w2, b2, w3, b3 = params
    B = x_nchw.shape[0]
    K = w1.shape[0]            # 784
    F1 = w1.shape[1]           # 512
    H = w2.shape[1]
    assert H < _HP, "Pallas path packs per-row KL into lane H; requires H < 128"

    # ---- batch tiling (review items 1 & 2) --------------------------------
    B8 = _round_up(B, 8)
    if B8 >= 2 * _MAX_TB:
        TB = _MAX_TB                              # many tiles
    elif B8 >= 128:
        TB = _round_up(-(-B8 // 2), 8)            # exactly 2 tiles -> 2 TCs on v7x
    else:
        TB = B8                                   # tiny batch: single tile
    B_pad = _round_up(B8, TB)
    num_tiles = B_pad // TB

    # x stays f32, K stays 784 (full-extent block); only batch rows are padded.
    x_flat = x_nchw.reshape(B, K)
    x_p = jnp.pad(x_flat, ((0, B_pad - B), (0, 0)))

    # bf16 MXU weights.  w2/w3 outputs each padded to a 128-lane boundary
    # before concatenation; biases stay f32.
    w1_b = w1.astype(jnp.bfloat16)
    w23 = jnp.concatenate(
        [jnp.pad(w2, ((0, 0), (0, _HP - H))),
         jnp.pad(w3, ((0, 0), (0, _HP - H)))], axis=1).astype(jnp.bfloat16)
    b23 = jnp.concatenate(
        [jnp.pad(b2, ((0, 0), (0, _HP - H))),
         jnp.pad(b3, ((0, 0), (0, _HP - H)))], axis=1)        # [1, 2*_HP] f32

    noise_p = jnp.pad(noise, ((0, B_pad - B), (0, _HP - H)))  # [B_pad, _HP]

    flops = 2 * B_pad * K * F1 + 2 * B_pad * F1 * (2 * _HP) + 10 * B_pad * _HP
    bytes_accessed = (x_p.size * 4 + w1_b.size * 2 + w23.size * 2
                      + b1.size * 4 + b23.size * 4 + noise_p.size * 4
                      + B_pad * _HP * 4)

    out_slab = pl.pallas_call(
        functools.partial(_vae_kernel, hidden_dim=H),
        out_shape=jax.ShapeDtypeStruct((B_pad, _HP), jnp.float32),
        grid=(num_tiles,),
        in_specs=[
            pl.BlockSpec((TB, K), lambda i: (i, 0)),          # x (f32, full-K block)
            pl.BlockSpec((K, F1), lambda i: (0, 0)),          # w1 (VMEM-resident)
            pl.BlockSpec((1, F1), lambda i: (0, 0)),          # b1
            pl.BlockSpec((F1, 2 * _HP), lambda i: (0, 0)),    # fused, lane-padded w2|w3
            pl.BlockSpec((1, 2 * _HP), lambda i: (0, 0)),     # fused b2|b3
            pl.BlockSpec((TB, _HP), lambda i: (i, 0)),        # noise (lane-padded)
        ],
        out_specs=pl.BlockSpec((TB, _HP), lambda i: (i, 0)),  # hidden + KL slab
        compiler_params=pltpu.CompilerParams(
            dimension_semantics=("parallel",)),
        cost_estimate=pl.CostEstimate(
            flops=flops,
            transcendentals=B_pad * _HP,
            bytes_accessed=bytes_accessed),
    )(x_p, w1_b, b1, w23, b23, noise_p)

    hidden = out_slab[:B, :H]           # padded rows / lanes never escape
    kl = jnp.sum(out_slab[:B, H])       # per-row KL packed at lane H
    return hidden, kl


def _vae_encoder_xla(x_nchw, params, noise):
    """Plain fused-XLA fallback (f32) for tiny batches / large hidden dims."""
    x = x_nchw.reshape(x_nchw.shape[0], -1)
    w1, b1, w2, b2, w3, b3 = params
    h = jnp.maximum(x @ w1 + b1, 0.0)
    mu = h @ w2 + b2
    log_sigma = h @ w3 + b3
    sigma = jnp.exp(log_sigma)
    hidden = mu + noise * sigma
    kl = jnp.sum(sigma ** 2 + mu ** 2 - log_sigma - 0.5)
    return hidden, kl


@functools.partial(jax.jit, static_argnames=("use_pallas",))
def vae_encoder(x_nchw, params, noise, use_pallas=None):
    """x_nchw: [B, 1, 28, 28] f32.  Returns (hidden [B, H] f32, kl scalar f32)."""
    B = x_nchw.shape[0]
    H = params[2].shape[1]
    if use_pallas is None:
        # Below ~64 rows the fixed pallas_call / pipeline overhead dominates;
        # a fused XLA matmul wins there on every TPU generation.
        use_pallas = (B >= 64) and (H < _HP)
    if use_pallas:
        return _vae_encoder_pallas(x_nchw, params, noise)
    return _vae_encoder_xla(x_nchw, params, noise)


def init_params(key, hidden_dim=2):
    """Deterministic parameter init mimicking nn.Linear default (uniform)."""
    ks = jax.random.split(key, 6)

    def linear(kw, kb, fan_in, fan_out):
        bound = 1.0 / jnp.sqrt(fan_in)
        w = jax.random.uniform(kw, (fan_in, fan_out), jnp.float32, -bound, bound)
        b = jax.random.uniform(kb, (1, fan_out), jnp.float32, -bound, bound)
        return w, b

    w1, b1 = linear(ks[0], ks[1], 28 * 28, 512)
    w2, b2 = linear(ks[2], ks[3], 512, hidden_dim)
    w3, b3 = linear(ks[4], ks[5], 512, hidden_dim)
    return (w1, b1, w2, b2, w3, b3)


def reference_f32(x_nchw, params, noise):
    """Exact PyTorch-equivalent math in f32."""
    return _vae_encoder_xla(x_nchw, params, noise)


def reference_bf16(x_nchw, params, noise):
    """Pure-JAX mirror of the kernel's precision choices (bf16 MXU, f32 acc)."""
    x = x_nchw.reshape(x_nchw.shape[0], -1).astype(jnp.bfloat16)
    w1, b1, w2, b2, w3, b3 = params
    h = jnp.maximum(
        jnp.dot(x, w1.astype(jnp.bfloat16),
                preferred_element_type=jnp.float32) + b1, 0.0)
    w23 = jnp.concatenate([w2, w3], axis=1).astype(jnp.bfloat16)
    b23 = jnp.concatenate([b2, b3], axis=1)
    mulog = jnp.dot(h.astype(jnp.bfloat16), w23,
                    preferred_element_type=jnp.float32) + b23
    H = w2.shape[1]
    mu, log_sigma = mulog[:, :H], mulog[:, H:]
    sigma = jnp.exp(log_sigma)
    hidden = mu + noise * sigma
    kl = jnp.sum(sigma ** 2 + mu ** 2 - log_sigma - 0.5)
    return hidden, kl


if __name__ == "__main__":
    key = jax.random.PRNGKey(0)
    k_param, k_x, k_noise, k_x2, k_noise2 = jax.random.split(key, 5)

    HIDDEN = 2
    params = init_params(k_param, hidden_dim=HIDDEN)

    # --- small demo batch (force the Pallas path so the kernel runs) -------
    B = 2
    x = jax.random.normal(k_x, (B, 1, 28, 28), jnp.float32)
    # Deterministic stand-in for self.noise_dist.sample(mu.shape).
    noise = jax.random.normal(k_noise, (B, HIDDEN), jnp.float32)

    hidden, kl = jax.block_until_ready(
        vae_encoder(x, params, noise, use_pallas=True))

    # Tight check against a pure-JAX mirror of the kernel's bf16/f32 math.
    h_emu, kl_emu = reference_bf16(x, params, noise)
    assert jnp.allclose(hidden, h_emu, atol=1e-3, rtol=1e-3), "hidden vs bf16 emu"
    assert jnp.allclose(kl, kl_emu, atol=1e-2, rtol=2e-3), "kl vs bf16 emu"

    # Loose sanity check against the full-f32 PyTorch-equivalent math.
    h_f32, kl_f32 = reference_f32(x, params, noise)
    assert jnp.allclose(hidden, h_f32, atol=1e-1, rtol=5e-2), "hidden vs f32 ref"
    assert jnp.allclose(kl, kl_f32, atol=2e-1, rtol=5e-2), "kl vs f32 ref"

    # --- larger batch: exercises batch padding + the 2-tile parallel grid ---
    B2 = 200
    x2 = jax.random.normal(k_x2, (B2, 1, 28, 28), jnp.float32)
    noise2 = jax.random.normal(k_noise2, (B2, HIDDEN), jnp.float32)

    hidden2, kl2 = jax.block_until_ready(
        vae_encoder(x2, params, noise2, use_pallas=True))

    h2_emu, kl2_emu = reference_bf16(x2, params, noise2)
    assert jnp.allclose(hidden2, h2_emu, atol=2e-3, rtol=2e-3), "hidden2 vs bf16 emu"
    assert jnp.allclose(kl2, kl2_emu, atol=1e-1, rtol=2e-3), "kl2 vs bf16 emu"

    print("KERNEL_OK")
</pallas_src>

<mosaic_0001>
module attributes {stable_mosaic.version = 11 : i64} {
  func.func @_vae_kernel(%arg0: i32, %arg1: memref<8x784xf32, #tpu.memory_space<vmem>>, %arg2: memref<784x512xbf16, #tpu.memory_space<vmem>>, %arg3: memref<1x512xf32, #tpu.memory_space<vmem>>, %arg4: memref<512x256xbf16, #tpu.memory_space<vmem>>, %arg5: memref<1x256xf32, #tpu.memory_space<vmem>>, %arg6: memref<8x128xf32, #tpu.memory_space<vmem>>, %arg7: memref<8x128xf32, #tpu.memory_space<vmem>>) attributes {dimension_semantics = [#tpu.dimension_semantics<parallel>], iteration_bounds = array<i64: 1>, scalar_prefetch = 0 : i64, scratch_operands = 0 : i64, tpu.core_type = #tpu.core_type<tc>, window_params = [{transform_indices = @transform_0, window_bounds = array<i64: 8, 784>}, {pipeline_mode = #tpu.pipeline_mode<synchronous>, transform_indices = @transform_1, window_bounds = array<i64: 784, 512>}, {pipeline_mode = #tpu.pipeline_mode<synchronous>, transform_indices = @transform_2, window_bounds = array<i64: 1, 512>}, {pipeline_mode = #tpu.pipeline_mode<synchronous>, transform_indices = @transform_3, window_bounds = array<i64: 512, 256>}, {pipeline_mode = #tpu.pipeline_mode<synchronous>, transform_indices = @transform_4, window_bounds = array<i64: 1, 256>}, {transform_indices = @transform_5, window_bounds = array<i64: 8, 128>}, {transform_indices = @transform_6, window_bounds = array<i64: 8, 128>}]} {
    %c0 = arith.constant 0 : index
    %c0_0 = arith.constant 0 : index
    %0 = vector.load %arg1[%c0, %c0_0] : memref<8x784xf32, #tpu.memory_space<vmem>>, vector<8x784xf32>
    %1 = arith.truncf %0 : vector<8x784xf32> to vector<8x784xbf16>
    %c0_1 = arith.constant 0 : index
    %c0_2 = arith.constant 0 : index
    %2 = vector.load %arg2[%c0_1, %c0_2] : memref<784x512xbf16, #tpu.memory_space<vmem>>, vector<784x512xbf16>
    %cst = arith.constant dense<0.000000e+00> : vector<8x512xf32>
    %3 = tpu.matmul %1, %2, %cst {dimension_numbers = #tpu.dot_dimension_numbers<[1], [0], [0], [1], [0, 0, 1, 1], [], []>} : vector<8x784xbf16>, vector<784x512xbf16>, vector<8x512xf32> -> vector<8x512xf32>
    %c0_3 = arith.constant 0 : index
    %c0_4 = arith.constant 0 : index
    %4 = vector.load %arg3[%c0_3, %c0_4] : memref<1x512xf32, #tpu.memory_space<vmem>>, vector<1x512xf32>
    %5 = vector.broadcast %4 : vector<1x512xf32> to vector<8x512xf32>
    %6 = arith.addf %3, %5 : vector<8x512xf32>
    %cst_5 = arith.constant 0.000000e+00 : f32
    %7 = vector.broadcast %cst_5 : f32 to vector<8x512xf32>
    %8 = arith.maximumf %6, %7 : vector<8x512xf32>
    %9 = arith.truncf %8 : vector<8x512xf32> to vector<8x512xbf16>
    %c0_6 = arith.constant 0 : index
    %c0_7 = arith.constant 0 : index
    %10 = vector.load %arg4[%c0_6, %c0_7] : memref<512x256xbf16, #tpu.memory_space<vmem>>, vector<512x256xbf16>
    %cst_8 = arith.constant dense<0.000000e+00> : vector<8x256xf32>
    %11 = tpu.matmul %9, %10, %cst_8 {dimension_numbers = #tpu.dot_dimension_numbers<[1], [0], [0], [1], [0, 0, 1, 1], [], []>} : vector<8x512xbf16>, vector<512x256xbf16>, vector<8x256xf32> -> vector<8x256xf32>
    %c0_9 = arith.constant 0 : index
    %c0_10 = arith.constant 0 : index
    %12 = vector.load %arg5[%c0_9, %c0_10] : memref<1x256xf32, #tpu.memory_space<vmem>>, vector<1x256xf32>
    %13 = vector.broadcast %12 : vector<1x256xf32> to vector<8x256xf32>
    %14 = arith.addf %11, %13 : vector<8x256xf32>
    %15 = vector.extract_strided_slice %14 {offsets = [0, 0], sizes = [8, 128], strides = [1, 1]} : vector<8x256xf32> to vector<8x128xf32>
    %16 = vector.extract_strided_slice %14 {offsets = [0, 128], sizes = [8, 128], strides = [1, 1]} : vector<8x256xf32> to vector<8x128xf32>
    %17 = math.exp %16 : vector<8x128xf32>
    %c0_11 = arith.constant 0 : index
    %c0_12 = arith.constant 0 : index
    %18 = vector.load %arg6[%c0_11, %c0_12] : memref<8x128xf32, #tpu.memory_space<vmem>>, vector<8x128xf32>
    %19 = arith.mulf %18, %17 : vector<8x128xf32>
    %20 = arith.addf %15, %19 : vector<8x128xf32>
    %21 = tpu.iota {dimensions = array<i32: 1>} : vector<8x128xi32>
    %c2_i32 = arith.constant 2 : i32
    %22 = vector.broadcast %c2_i32 : i32 to vector<8x128xi32>
    %23 = arith.cmpi slt, %21, %22 : vector<8x128xi32>
    %24 = arith.mulf %17, %17 : vector<8x128xf32>
    %25 = arith.mulf %15, %15 : vector<8x128xf32>
    %26 = arith.addf %24, %25 : vector<8x128xf32>
    %27 = arith.subf %26, %16 : vector<8x128xf32>
    %cst_13 = arith.constant 5.000000e-01 : f32
    %28 = vector.broadcast %cst_13 : f32 to vector<8x128xf32>
    %29 = arith.subf %27, %28 : vector<8x128xf32>
    %cst_14 = arith.constant 0.000000e+00 : f32
    %30 = vector.broadcast %cst_14 : f32 to vector<8x128xf32>
    %31 = arith.select %23, %29, %30 : vector<8x128xi1>, vector<8x128xf32>
    %cst_15 = arith.constant dense<0.000000e+00> : vector<8xf32>
    %32 = vector.multi_reduction <add>, %31, %cst_15 [1] : vector<8x128xf32> to vector<8xf32>
    %33 = vector.shape_cast %32 : vector<8xf32> to vector<8x1xf32>
    %c2_i32_16 = arith.constant 2 : i32
    %34 = vector.broadcast %c2_i32_16 : i32 to vector<8x128xi32>
    %35 = arith.cmpi eq, %21, %34 : vector<8x128xi32>
    %36 = vector.shape_cast %33 : vector<8x1xf32> to vector<8x1xf32>
    %37 = vector.broadcast %36 : vector<8x1xf32> to vector<8x128xf32>
    %38 = arith.select %35, %37, %20 : vector<8x128xi1>, vector<8x128xf32>
    %c0_17 = arith.constant 0 : index
    %c0_18 = arith.constant 0 : index
    %39 = vector.load %arg7[%c0_17, %c0_18] : memref<8x128xf32, #tpu.memory_space<vmem>>, vector<8x128xf32>
    tpu.vector_store %arg7[%c0_17, %c0_18], %38 {strides = array<i32>} : memref<8x128xf32, #tpu.memory_space<vmem>>, vector<8x128xf32>,
    return
  }
  func.func @transform_0(%arg0: i32) -> (i32, i32) {
    %c0_i32 = arith.constant 0 : i32
    %c0_i32_0 = arith.constant 0 : i32
    return %arg0, %c0_i32 : i32, i32
  }
  func.func @transform_1(%arg0: i32) -> (i32, i32) {
    %c0_i32 = arith.constant 0 : i32
    %c0_i32_0 = arith.constant 0 : i32
    %c0_i32_1 = arith.constant 0 : i32
    return %c0_i32, %c0_i32_0 : i32, i32
  }
  func.func @transform_2(%arg0: i32) -> (i32, i32) {
    %c0_i32 = arith.constant 0 : i32
    %c0_i32_0 = arith.constant 0 : i32
    %c0_i32_1 = arith.constant 0 : i32
    return %c0_i32, %c0_i32_0 : i32, i32
  }
  func.func @transform_3(%arg0: i32) -> (i32, i32) {
    %c0_i32 = arith.constant 0 : i32
    %c0_i32_0 = arith.constant 0 : i32
    %c0_i32_1 = arith.constant 0 : i32
    return %c0_i32, %c0_i32_0 : i32, i32
  }
  func.func @transform_4(%arg0: i32) -> (i32, i32) {
    %c0_i32 = arith.constant 0 : i32
    %c0_i32_0 = arith.constant 0 : i32
    %c0_i32_1 = arith.constant 0 : i32
    return %c0_i32, %c0_i32_0 : i32, i32
  }
  func.func @transform_5(%arg0: i32) -> (i32, i32) {
    %c0_i32 = arith.constant 0 : i32
    %c0_i32_0 = arith.constant 0 : i32
    return %arg0, %c0_i32 : i32, i32
  }
  func.func @transform_6(%arg0: i32) -> (i32, i32) {
    %c0_i32 = arith.constant 0 : i32
    %c0_i32_0 = arith.constant 0 : i32
    return %arg0, %c0_i32 : i32, i32
  }
}

</mosaic_0001>

<llo_original>
// kernel: vae_encoder.1
$region0: #{vae_encoder.1}
  #allocation0 [shape = 'u32[]', space=smem, size = 0x4, offset = 0x4, fixed_abs, tag = 'smem constant byte address 0x4 - core index']
  #allocation1 [shape = 'u32[144,128]{1,0:T(1,128)}', space=vmem, size = 0x12000, scoped, tag = 'internal scratch']
  %s0 = inlined_call_operand.vmem [shape: f32[8,784], index: 0, kind: input, shape index: {}]
  %s1 = inlined_call_operand.vmem [shape: bf16[784,512], index: 1, kind: input, shape index: {}]
  %s2 = inlined_call_operand.vmem [shape: f32[1,512], index: 2, kind: input, shape index: {}]
  %s3 = inlined_call_operand.vmem [shape: bf16[512,256], index: 3, kind: input, shape index: {}]
  %s4 = inlined_call_operand.vmem [shape: f32[1,256], index: 4, kind: input, shape index: {}]
  %s5 = inlined_call_operand.vmem [shape: f32[8,128], index: 5, kind: input, shape index: {}]
  %s6 = inlined_call_operand.vmem [shape: f32[8,128], index: 6, kind: output, shape index: {}]
  %s7 = sld [smem:[#allocation0]]
  $region34: #{vae_encoder.1} parent=0
    _
  %s9 = ssub.s32 1, %s7
  %s10 = scalar_select 0, %s9, %s7
  // Predicated region
  $region2: #{vae_encoder.1} parent=0 // pred_check
    _
  $region3: #{vae_encoder.1} parent=0 // pred_check_branch
    %12 = sbr.rel (0) target = $region5
  $region4: #{vae_encoder.1} parent=0 // pred_region
    _
  $region5: #{vae_encoder.1} parent=0 // pred_fallthru
    _
  // Predicated region
  $region6: #{vae_encoder.1} parent=0 // pred_check
    _
  $region7: #{vae_encoder.1} parent=0 // pred_check_branch
    %14 = sbr.rel (0) target = $region9
  $region8: #{vae_encoder.1} parent=0 // pred_region
    _
  $region9: #{vae_encoder.1} parent=0 // pred_fallthru
    _
  // Predicated region
  $region10: #{vae_encoder.1} parent=0 // pred_check
    _
  $region11: #{vae_encoder.1} parent=0 // pred_check_branch
    %16 = sbr.rel (0) target = $region13
  $region12: #{vae_encoder.1} parent=0 // pred_region
    _
  $region13: #{vae_encoder.1} parent=0 // pred_fallthru
    _
  // Predicated region
  $region14: #{vae_encoder.1} parent=0 // pred_check
    _
  $region15: #{vae_encoder.1} parent=0 // pred_check_branch
    %18 = sbr.rel (0) target = $region17
  $region16: #{vae_encoder.1} parent=0 // pred_region
    _
  $region17: #{vae_encoder.1} parent=0 // pred_fallthru
    _
  // Predicated region
  $region18: #{vae_encoder.1} parent=0 // pred_check
    _
  $region19: #{vae_encoder.1} parent=0 // pred_check_branch
    %20 = sbr.rel (0) target = $region21
  $region20: #{vae_encoder.1} parent=0 // pred_region
    _
  $region21: #{vae_encoder.1} parent=0 // pred_fallthru
    _
  // Predicated region
  $region22: #{vae_encoder.1} parent=0 // pred_check
    _
  $region23: #{vae_encoder.1} parent=0 // pred_check_branch
    %22 = sbr.rel (0) target = $region25
  $region24: #{vae_encoder.1} parent=0 // pred_region
    _
  $region25: #{vae_encoder.1} parent=0 // pred_fallthru
    _
  %v24 = vld [vmem:[%s0] sm:$0xff]
  %v25 = vld [vmem:[%s0 + $0x8] sm:$0xff]
  %v26 = vld [vmem:[%s0 + $0x10] sm:$0xff]
  %v27 = vld [vmem:[%s0 + $0x18] sm:$0xff]
  %v28 = vld [vmem:[%s0 + $0x20] sm:$0xff]
  %v29 = vld [vmem:[%s0 + $0x28] sm:$0xff]
  %v30 = vld [vmem:[%s0 + $0x30] sm:$0xff]
  %v31 = vpack.c.bf16 %v24, %v24
  %v32 = vpack.c.bf16 %v25, %v25
  %v33 = vpack.c.bf16 %v26, %v26
  %v34 = vpack.c.bf16 %v27, %v27
  %v35 = vpack.c.bf16 %v28, %v28
  %v36 = vpack.c.bf16 %v29, %v29
  %v37 = vpack.c.bf16 %v30, %v30
  %v38 = vld [vmem:[%s1] sm:$0xff]
  %v39 = vld [vmem:[%s1 + $0x8] sm:$0xff]
  %v40 = vld [vmem:[%s1 + $0x10] sm:$0xff]
  %v41 = vld [vmem:[%s1 + $0x18] sm:$0xff]
  %v42 = vld [vmem:[%s1 + $0x20] sm:$0xff]
  %v43 = vld [vmem:[%s1 + $0x28] sm:$0xff]
  %v44 = vld [vmem:[%s1 + $0x30] sm:$0xff]
  %v45 = vld [vmem:[%s1 + $0x38] sm:$0xff]
  %v46 = vld [vmem:[%s1 + $0x40] sm:$0xff]
  %v47 = vld [vmem:[%s1 + $0x48] sm:$0xff]
  %v48 = vld [vmem:[%s1 + $0x50] sm:$0xff]
  %v49 = vld [vmem:[%s1 + $0x58] sm:$0xff]
  %v50 = vld [vmem:[%s1 + $0x60] sm:$0xff]
  %v51 = vld [vmem:[%s1 + $0x68] sm:$0xff]
  %v52 = vld [vmem:[%s1 + $0x70] sm:$0xff]
  %v53 = vld [vmem:[%s1 + $0x78] sm:$0xff]
  %v54 = vld [vmem:[%s1 + $0x80] sm:$0xff]
  %v55 = vld [vmem:[%s1 + $0x88] sm:$0xff]
  %v56 = vld [vmem:[%s1 + $0x90] sm:$0xff]
  %v57 = vld [vmem:[%s1 + $0x98] sm:$0xff]
  %v58 = vld [vmem:[%s1 + $0xa0] sm:$0xff]
  %v59 = vld [vmem:[%s1 + $0xa8] sm:$0xff]
  %v60 = vld [vmem:[%s1 + $0xb0] sm:$0xff]
  %v61 = vld [vmem:[%s1 + $0xb8] sm:$0xff]
  %v62 = vld [vmem:[%s1 + $0xc0] sm:$0xff]
  %v63 = vld [vmem:[%s1 + $0xc8] sm:$0xff]
  %v64 = vld [vmem:[%s1 + $0xd0] sm:$0xff]
  %v65 = vld [vmem:[%s1 + $0xd8] sm:$0xff]
  %v66 = vld [vmem:[%s1 + $0xe0] sm:$0xff]
  %v67 = vld [vmem:[%s1 + $0xe8] sm:$0xff]
  %v68 = vld [vmem:[%s1 + $0xf0] sm:$0xff]
  %v69 = vld [vmem:[%s1 + $0xf8] sm:$0xff]
  %v70 = vld [vmem:[%s1 + $0x100] sm:$0xff]
  %v71 = vld [vmem:[%s1 + $0x108] sm:$0xff]
  %v72 = vld [vmem:[%s1 + $0x110] sm:$0xff]
  %v73 = vld [vmem:[%s1 + $0x118] sm:$0xff]
  %v74 = vld [vmem:[%s1 + $0x120] sm:$0xff]
  %v75 = vld [vmem:[%s1 + $0x128] sm:$0xff]
  %v76 = vld [vmem:[%s1 + $0x130] sm:$0xff]
  %v77 = vld [vmem:[%s1 + $0x138] sm:$0xff]
  %v78 = vld [vmem:[%s1 + $0x140] sm:$0xff]
  %v79 = vld [vmem:[%s1 + $0x148] sm:$0xff]
  %v80 = vld [vmem:[%s1 + $0x150] sm:$0xff]
  %v81 = vld [vmem:[%s1 + $0x158] sm:$0xff]
  %v82 = vld [vmem:[%s1 + $0x160] sm:$0xff]
  %v83 = vld [vmem:[%s1 + $0x168] sm:$0xff]
  %v84 = vld [vmem:[%s1 + $0x170] sm:$0xff]
  %v85 = vld [vmem:[%s1 + $0x178] sm:$0xff]
  %v86 = vld [vmem:[%s1 + $0x180] sm:$0xff]
  %v87 = vld [vmem:[%s1 + $0x188] sm:$0xff]
  %v88 = vld [vmem:[%s1 + $0x190] sm:$0xff]
  %v89 = vld [vmem:[%s1 + $0x198] sm:$0xff]
  %v90 = vld [vmem:[%s1 + $0x1a0] sm:$0xff]
  %v91 = vld [vmem:[%s1 + $0x1a8] sm:$0xff]
  %v92 = vld [vmem:[%s1 + $0x1b0] sm:$0xff]
  %v93 = vld [vmem:[%s1 + $0x1b8] sm:$0xff]
  %v94 = vld [vmem:[%s1 + $0x1c0] sm:$0xff]
  %v95 = vld [vmem:[%s1 + $0x1c8] sm:$0xff]
  %v96 = vld [vmem:[%s1 + $0x1d0] sm:$0xff]
  %v97 = vld [vmem:[%s1 + $0x1d8] sm:$0xff]
  %v98 = vld [vmem:[%s1 + $0x1e0] sm:$0xff]
  %v99 = vld [vmem:[%s1 + $0x1e8] sm:$0xff]
  %v100 = vld [vmem:[%s1 + $0x1f0] sm:$0xff]
  %v101 = vld [vmem:[%s1 + $0x1f8] sm:$0xff]
  %v102 = vld [vmem:[%s1 + $0x200] sm:$0xff]
  %v103 = vld [vmem:[%s1 + $0x208] sm:$0xff]
  %v104 = vld [vmem:[%s1 + $0x210] sm:$0xff]
  %v105 = vld [vmem:[%s1 + $0x218] sm:$0xff]
  %v106 = vld [vmem:[%s1 + $0x220] sm:$0xff]
  %v107 = vld [vmem:[%s1 + $0x228] sm:$0xff]
  %v108 = vld [vmem:[%s1 + $0x230] sm:$0xff]
  %v109 = vld [vmem:[%s1 + $0x238] sm:$0xff]
  %v110 = vld [vmem:[%s1 + $0x240] sm:$0xff]
  %v111 = vld [vmem:[%s1 + $0x248] sm:$0xff]
  %v112 = vld [vmem:[%s1 + $0x250] sm:$0xff]
  %v113 = vld [vmem:[%s1 + $0x258] sm:$0xff]
  %v114 = vld [vmem:[%s1 + $0x260] sm:$0xff]
  %v115 = vld [vmem:[%s1 + $0x268] sm:$0xff]
  %v116 = vld [vmem:[%s1 + $0x270] sm:$0xff]
  %v117 = vld [vmem:[%s1 + $0x278] sm:$0xff]
  %v118 = vld [vmem:[%s1 + $0x280] sm:$0xff]
  %v119 = vld [vmem:[%s1 + $0x288] sm:$0xff]
  %v120 = vld [vmem:[%s1 + $0x290] sm:$0xff]
  %v121 = vld [vmem:[%s1 + $0x298] sm:$0xff]
  %v122 = vld [vmem:[%s1 + $0x2a0] sm:$0xff]
  %v123 = vld [vmem:[%s1 + $0x2a8] sm:$0xff]
  %v124 = vld [vmem:[%s1 + $0x2b0] sm:$0xff]
  %v125 = vld [vmem:[%s1 + $0x2b8] sm:$0xff]
  %v126 = vld [vmem:[%s1 + $0x2c0] sm:$0xff]
  %v127 = vld [vmem:[%s1 + $0x2c8] sm:$0xff]
  %v128 = vld [vmem:[%s1 + $0x2d0] sm:$0xff]
  %v129 = vld [vmem:[%s1 + $0x2d8] sm:$0xff]
  %v130 = vld [vmem:[%s1 + $0x2e0] sm:$0xff]
  %v131 = vld [vmem:[%s1 + $0x2e8] sm:$0xff]
  %v132 = vld [vmem:[%s1 + $0x2f0] sm:$0xff]
  %v133 = vld [vmem:[%s1 + $0x2f8] sm:$0xff]
  %v134 = vld [vmem:[%s1 + $0x300] sm:$0xff]
  %v135 = vld [vmem:[%s1 + $0x308] sm:$0xff]
  %v136 = vld [vmem:[%s1 + $0x310] sm:$0xff]
  %v137 = vld [vmem:[%s1 + $0x318] sm:$0xff]
  %v138 = vld [vmem:[%s1 + $0x320] sm:$0xff]
  %v139 = vld [vmem:[%s1 + $0x328] sm:$0xff]
  %v140 = vld [vmem:[%s1 + $0x330] sm:$0xff]
  %v141 = vld [vmem:[%s1 + $0x338] sm:$0xff]
  %v142 = vld [vmem:[%s1 + $0x340] sm:$0xff]
  %v143 = vld [vmem:[%s1 + $0x348] sm:$0xff]
  %v144 = vld [vmem:[%s1 + $0x350] sm:$0xff]
  %v145 = vld [vmem:[%s1 + $0x358] sm:$0xff]
  %v146 = vld [vmem:[%s1 + $0x360] sm:$0xff]
  %v147 = vld [vmem:[%s1 + $0x368] sm:$0xff]
  %v148 = vld [vmem:[%s1 + $0x370] sm:$0xff]
  %v149 = vld [vmem:[%s1 + $0x378] sm:$0xff]
  %v150 = vld [vmem:[%s1 + $0x380] sm:$0xff]
  %v151 = vld [vmem:[%s1 + $0x388] sm:$0xff]
  %v152 = vld [vmem:[%s1 + $0x390] sm:$0xff]
  %v153 = vld [vmem:[%s1 + $0x398] sm:$0xff]
  %v154 = vld [vmem:[%s1 + $0x3a0] sm:$0xff]
  %v155 = vld [vmem:[%s1 + $0x3a8] sm:$0xff]
  %v156 = vld [vmem:[%s1 + $0x3b0] sm:$0xff]
  %v157 = vld [vmem:[%s1 + $0x3b8] sm:$0xff]
  %v158 = vld [vmem:[%s1 + $0x3c0] sm:$0xff]
  %v159 = vld [vmem:[%s1 + $0x3c8] sm:$0xff]
  %v160 = vld [vmem:[%s1 + $0x3d0] sm:$0xff]
  %v161 = vld [vmem:[%s1 + $0x3d8] sm:$0xff]
  %v162 = vld [vmem:[%s1 + $0x3e0] sm:$0xff]
  %v163 = vld [vmem:[%s1 + $0x3e8] sm:$0xff]
  %v164 = vld [vmem:[%s1 + $0x3f0] sm:$0xff]
  %v165 = vld [vmem:[%s1 + $0x3f8] sm:$0xff]
  %v166 = vld [vmem:[%s1 + $0x400] sm:$0xff]
  %v167 = vld [vmem:[%s1 + $0x408] sm:$0xff]
  %v168 = vld [vmem:[%s1 + $0x410] sm:$0xff]
  %v169 = vld [vmem:[%s1 + $0x418] sm:$0xff]
  %v170 = vld [vmem:[%s1 + $0x420] sm:$0xff]
  %v171 = vld [vmem:[%s1 + $0x428] sm:$0xff]
  %v172 = vld [vmem:[%s1 + $0x430] sm:$0xff]
  %v173 = vld [vmem:[%s1 + $0x438] sm:$0xff]
  %v174 = vld [vmem:[%s1 + $0x440] sm:$0xff]
  %v175 = vld [vmem:[%s1 + $0x448] sm:$0xff]
  %v176 = vld [vmem:[%s1 + $0x450] sm:$0xff]
  %v177 = vld [vmem:[%s1 + $0x458] sm:$0xff]
  %v178 = vld [vmem:[%s1 + $0x460] sm:$0xff]
  %v179 = vld [vmem:[%s1 + $0x468] sm:$0xff]
  %v180 = vld [vmem:[%s1 + $0x470] sm:$0xff]
  %v181 = vld [vmem:[%s1 + $0x478] sm:$0xff]
  %v182 = vld [vmem:[%s1 + $0x480] sm:$0xff]
  %v183 = vld [vmem:[%s1 + $0x488] sm:$0xff]
  %v184 = vld [vmem:[%s1 + $0x490] sm:$0xff]
  %v185 = vld [vmem:[%s1 + $0x498] sm:$0xff]
  %v186 = vld [vmem:[%s1 + $0x4a0] sm:$0xff]
  %v187 = vld [vmem:[%s1 + $0x4a8] sm:$0xff]
  %v188 = vld [vmem:[%s1 + $0x4b0] sm:$0xff]
  %v189 = vld [vmem:[%s1 + $0x4b8] sm:$0xff]
  %v190 = vld [vmem:[%s1 + $0x4c0] sm:$0xff]
  %v191 = vld [vmem:[%s1 + $0x4c8] sm:$0xff]
  %v192 = vld [vmem:[%s1 + $0x4d0] sm:$0xff]
  %v193 = vld [vmem:[%s1 + $0x4d8] sm:$0xff]
  %v194 = vld [vmem:[%s1 + $0x4e0] sm:$0xff]
  %v195 = vld [vmem:[%s1 + $0x4e8] sm:$0xff]
  %v196 = vld [vmem:[%s1 + $0x4f0] sm:$0xff]
  %v197 = vld [vmem:[%s1 + $0x4f8] sm:$0xff]
  %v198 = vld [vmem:[%s1 + $0x500] sm:$0xff]
  %v199 = vld [vmem:[%s1 + $0x508] sm:$0xff]
  %v200 = vld [vmem:[%s1 + $0x510] sm:$0xff]
  %v201 = vld [vmem:[%s1 + $0x518] sm:$0xff]
  %v202 = vld [vmem:[%s1 + $0x520] sm:$0xff]
  %v203 = vld [vmem:[%s1 + $0x528] sm:$0xff]
  %v204 = vld [vmem:[%s1 + $0x530] sm:$0xff]
  %v205 = vld [vmem:[%s1 + $0x538] sm:$0xff]
  %v206 = vld [vmem:[%s1 + $0x540] sm:$0xff]
  %v207 = vld [vmem:[%s1 + $0x548] sm:$0xff]
  %v208 = vld [vmem:[%s1 + $0x550] sm:$0xff]
  %v209 = vld [vmem:[%s1 + $0x558] sm:$0xff]
  %v210 = vld [vmem:[%s1 + $0x560] sm:$0xff]
  %v211 = vld [vmem:[%s1 + $0x568] sm:$0xff]
  %v212 = vld [vmem:[%s1 + $0x570] sm:$0xff]
  %v213 = vld [vmem:[%s1 + $0x578] sm:$0xff]
  %v214 = vld [vmem:[%s1 + $0x580] sm:$0xff]
  %v215 = vld [vmem:[%s1 + $0x588] sm:$0xff]
  %v216 = vld [vmem:[%s1 + $0x590] sm:$0xff]
  %v217 = vld [vmem:[%s1 + $0x598] sm:$0xff]
  %v218 = vld [vmem:[%s1 + $0x5a0] sm:$0xff]
  %v219 = vld [vmem:[%s1 + $0x5a8] sm:$0xff]
  %v220 = vld [vmem:[%s1 + $0x5b0] sm:$0xff]
  %v221 = vld [vmem:[%s1 + $0x5b8] sm:$0xff]
  %v222 = vld [vmem:[%s1 + $0x5c0] sm:$0xff]
  %v223 = vld [vmem:[%s1 + $0x5c8] sm:$0xff]
  %v224 = vld [vmem:[%s1 + $0x5d0] sm:$0xff]
  %v225 = vld [vmem:[%s1 + $0x5d8] sm:$0xff]
  %v226 = vld [vmem:[%s1 + $0x5e0] sm:$0xff]
  %v227 = vld [vmem:[%s1 + $0x5e8] sm:$0xff]
  %v228 = vld [vmem:[%s1 + $0x5f0] sm:$0xff]
  %v229 = vld [vmem:[%s1 + $0x5f8] sm:$0xff]
  %v230 = vld [vmem:[%s1 + $0x600] sm:$0xff]
  %v231 = vld [vmem:[%s1 + $0x608] sm:$0xff]
  %v232 = vld [vmem:[%s1 + $0x610] sm:$0xff]
  %v233 = vld [vmem:[%s1 + $0x618] sm:$0xff]
  %v234 = vld [vmem:[%s2] sm:$0xf]
  %v236 = vlaneseq
  %v237 = vshrl.u32 %v236, 7
  %v238 = vsub.s32 0, %v237
  %v239 = vrot.slane %v234, %v238
  %v240 = vlaneseq
  %v241 = vshrl.u32 %v240, 7
  %v242 = vsub.s32 1, %v241
  %v243 = vrot.slane %v234, %v242
  %v244 = vlaneseq
  %v245 = vshrl.u32 %v244, 7
  %v246 = vsub.s32 2, %v245
  %v247 = vrot.slane %v234, %v246
  %v248 = vlaneseq
  %v249 = vshrl.u32 %v248, 7
  %v250 = vsub.s32 3, %v249
  %v251 = vrot.slane %v234, %v250
  %v452 = vunpack.c.l.b16 %v38
  %v453 = vunpack.c.h.b16 %v38
  %v454 = vunpack.c.l.b16 %v39
  %v455 = vunpack.c.h.b16 %v39
  %v456 = vunpack.c.l.b16 %v40
  %v457 = vunpack.c.h.b16 %v40
  %v458 = vunpack.c.l.b16 %v41
  %v459 = vunpack.c.h.b16 %v41
  %v460 = vunpack.c.l.b16 %v42
  %v461 = vunpack.c.h.b16 %v42
  %v462 = vunpack.c.l.b16 %v43
  %v463 = vunpack.c.h.b16 %v43
  %v464 = vunpack.c.l.b16 %v44
  %v465 = vunpack.c.h.b16 %v44
  %v466 = vunpack.c.l.b16 %v45
  %v467 = vunpack.c.h.b16 %v45
  %v468 = vunpack.c.l.b16 %v46
  %v469 = vunpack.c.h.b16 %v46
  %v470 = vunpack.c.l.b16 %v47
  %v471 = vunpack.c.h.b16 %v47
  %v472 = vunpack.c.l.b16 %v48
  %v473 = vunpack.c.h.b16 %v48
  %v474 = vunpack.c.l.b16 %v49
  %v475 = vunpack.c.h.b16 %v49
  %v476 = vunpack.c.l.b16 %v50
  %v477 = vunpack.c.h.b16 %v50
  %v478 = vunpack.c.l.b16 %v51
  %v479 = vunpack.c.h.b16 %v51
  %v480 = vunpack.c.l.b16 %v52
  %v481 = vunpack.c.h.b16 %v52
  %v482 = vunpack.c.l.b16 %v53
  %v483 = vunpack.c.h.b16 %v53
  %v484 = vunpack.c.l.b16 %v54
  %v485 = vunpack.c.h.b16 %v54
  %v486 = vunpack.c.l.b16 %v55
  %v487 = vunpack.c.h.b16 %v55
  %v488 = vunpack.c.l.b16 %v56
  %v489 = vunpack.c.h.b16 %v56
  %v490 = vunpack.c.l.b16 %v57
  %v491 = vunpack.c.h.b16 %v57
  %v492 = vunpack.c.l.b16 %v58
  %v493 = vunpack.c.h.b16 %v58
  %v494 = vunpack.c.l.b16 %v59
  %v495 = vunpack.c.h.b16 %v59
  %v496 = vunpack.c.l.b16 %v60
  %v497 = vunpack.c.h.b16 %v60
  %v498 = vunpack.c.l.b16 %v61
  %v499 = vunpack.c.h.b16 %v61
  %v500 = vunpack.c.l.b16 %v62
  %v501 = vunpack.c.h.b16 %v62
  %v502 = vunpack.c.l.b16 %v63
  %v503 = vunpack.c.h.b16 %v63
  %v504 = vunpack.c.l.b16 %v64
  %v505 = vunpack.c.h.b16 %v64
  %v506 = vunpack.c.l.b16 %v65
  %v507 = vunpack.c.h.b16 %v65
  %v508 = vunpack.c.l.b16 %v66
  %v509 = vunpack.c.h.b16 %v66
  %v510 = vunpack.c.l.b16 %v67
  %v511 = vunpack.c.h.b16 %v67
  %v512 = vunpack.c.l.b16 %v68
  %v513 = vunpack.c.h.b16 %v68
  %v514 = vunpack.c.l.b16 %v69
  %v515 = vunpack.c.h.b16 %v69
  %v516 = vunpack.c.l.b16 %v70
  %v517 = vunpack.c.h.b16 %v70
  %v518 = vunpack.c.l.b16 %v71
  %v519 = vunpack.c.h.b16 %v71
  %v520 = vunpack.c.l.b16 %v72
  %v521 = vunpack.c.h.b16 %v72
  %v522 = vunpack.c.l.b16 %v73
  %v523 = vunpack.c.h.b16 %v73
  %v524 = vunpack.c.l.b16 %v74
  %v525 = vunpack.c.h.b16 %v74
  %v526 = vunpack.c.l.b16 %v75
  %v527 = vunpack.c.h.b16 %v75
  %v528 = vunpack.c.l.b16 %v76
  %v529 = vunpack.c.h.b16 %v76
  %v530 = vunpack.c.l.b16 %v77
  %v531 = vunpack.c.h.b16 %v77
  %v532 = vunpack.c.l.b16 %v78
  %v533 = vunpack.c.h.b16 %v78
  %v534 = vunpack.c.l.b16 %v79
  %v535 = vunpack.c.h.b16 %v79
  %v536 = vunpack.c.l.b16 %v80
  %v537 = vunpack.c.h.b16 %v80
  %v538 = vunpack.c.l.b16 %v81
  %v539 = vunpack.c.h.b16 %v81
  %v540 = vunpack.c.l.b16 %v82
  %v541 = vunpack.c.h.b16 %v82
  %v542 = vunpack.c.l.b16 %v83
  %v543 = vunpack.c.h.b16 %v83
  %v544 = vunpack.c.l.b16 %v84
  %v545 = vunpack.c.h.b16 %v84
  %v546 = vunpack.c.l.b16 %v85
  %v547 = vunpack.c.h.b16 %v85
  %v548 = vunpack.c.l.b16 %v86
  %v549 = vunpack.c.h.b16 %v86
  %v550 = vunpack.c.l.b16 %v87
  %v551 = vunpack.c.h.b16 %v87
  %v552 = vunpack.c.l.b16 %v88
  %v553 = vunpack.c.h.b16 %v88
  %v554 = vunpack.c.l.b16 %v89
  %v555 = vunpack.c.h.b16 %v89
  %v556 = vunpack.c.l.b16 %v90
  %v557 = vunpack.c.h.b16 %v90
  %v558 = vunpack.c.l.b16 %v91
  %v559 = vunpack.c.h.b16 %v91
  %v560 = vunpack.c.l.b16 %v92
  %v561 = vunpack.c.h.b16 %v92
  %v562 = vunpack.c.l.b16 %v93
  %v563 = vunpack.c.h.b16 %v93
  %v564 = vunpack.c.l.b16 %v94
  %v565 = vunpack.c.h.b16 %v94
  %v566 = vunpack.c.l.b16 %v95
  %v567 = vunpack.c.h.b16 %v95
  %v568 = vunpack.c.l.b16 %v96
  %v569 = vunpack.c.h.b16 %v96
  %v570 = vunpack.c.l.b16 %v97
  %v571 = vunpack.c.h.b16 %v97
  %v572 = vunpack.c.l.b16 %v98
  %v573 = vunpack.c.h.b16 %v98
  %v574 = vunpack.c.l.b16 %v99
  %v575 = vunpack.c.h.b16 %v99
  %v576 = vunpack.c.l.b16 %v100
  %v577 = vunpack.c.h.b16 %v100
  %v578 = vunpack.c.l.b16 %v101
  %v579 = vunpack.c.h.b16 %v101
  %v580 = vunpack.c.l.b16 %v102
  %v581 = vunpack.c.h.b16 %v102
  %v582 = vunpack.c.l.b16 %v103
  %v583 = vunpack.c.h.b16 %v103
  %v584 = vunpack.c.l.b16 %v104
  %v585 = vunpack.c.h.b16 %v104
  %v586 = vunpack.c.l.b16 %v105
  %v587 = vunpack.c.h.b16 %v105
  %v588 = vunpack.c.l.b16 %v106
  %v589 = vunpack.c.h.b16 %v106
  %v590 = vunpack.c.l.b16 %v107
  %v591 = vunpack.c.h.b16 %v107
  %v592 = vunpack.c.l.b16 %v108
  %v593 = vunpack.c.h.b16 %v108
  %v594 = vunpack.c.l.b16 %v109
  %v595 = vunpack.c.h.b16 %v109
  %v596 = vunpack.c.l.b16 %v110
  %v597 = vunpack.c.h.b16 %v110
  %v598 = vunpack.c.l.b16 %v111
  %v599 = vunpack.c.h.b16 %v111
  %v600 = vunpack.c.l.b16 %v112
  %v601 = vunpack.c.h.b16 %v112
  %v602 = vunpack.c.l.b16 %v113
  %v603 = vunpack.c.h.b16 %v113
  %v604 = vunpack.c.l.b16 %v114
  %v605 = vunpack.c.h.b16 %v114
  %v606 = vunpack.c.l.b16 %v115
  %v607 = vunpack.c.h.b16 %v115
  %v608 = vunpack.c.l.b16 %v116
  %v609 = vunpack.c.h.b16 %v116
  %v610 = vunpack.c.l.b16 %v117
  %v611 = vunpack.c.h.b16 %v117
  %v612 = vunpack.c.l.b16 %v118
  %v613 = vunpack.c.h.b16 %v118
  %v614 = vunpack.c.l.b16 %v119
  %v615 = vunpack.c.h.b16 %v119
  %v616 = vunpack.c.l.b16 %v120
  %v617 = vunpack.c.h.b16 %v120
  %v618 = vunpack.c.l.b16 %v121
  %v619 = vunpack.c.h.b16 %v121
  %v620 = vunpack.c.l.b16 %v122
  %v621 = vunpack.c.h.b16 %v122
  %v622 = vunpack.c.l.b16 %v123
  %v623 = vunpack.c.h.b16 %v123
  %v624 = vunpack.c.l.b16 %v124
  %v625 = vunpack.c.h.b16 %v124
  %v626 = vunpack.c.l.b16 %v125
  %v627 = vunpack.c.h.b16 %v125
  %v628 = vunpack.c.l.b16 %v126
  %v629 = vunpack.c.h.b16 %v126
  %v630 = vunpack.c.l.b16 %v127
  %v631 = vunpack.c.h.b16 %v127
  %v632 = vunpack.c.l.b16 %v128
  %v633 = vunpack.c.h.b16 %v128
  %v634 = vunpack.c.l.b16 %v129
  %v635 = vunpack.c.h.b16 %v129
  %v636 = vunpack.c.l.b16 %v130
  %v637 = vunpack.c.h.b16 %v130
  %v638 = vunpack.c.l.b16 %v131
  %v639 = vunpack.c.h.b16 %v131
  %v640 = vunpack.c.l.b16 %v132
  %v641 = vunpack.c.h.b16 %v132
  %v642 = vunpack.c.l.b16 %v133
  %v643 = vunpack.c.h.b16 %v133
  %v644 = vunpack.c.l.b16 %v134
  %v645 = vunpack.c.h.b16 %v134
  %v646 = vunpack.c.l.b16 %v135
  %v647 = vunpack.c.h.b16 %v135
  %v648 = vunpack.c.l.b16 %v136
  %v649 = vunpack.c.h.b16 %v136
  %v650 = vunpack.c.l.b16 %v137
  %v651 = vunpack.c.h.b16 %v137
  %v652 = vunpack.c.l.b16 %v138
  %v653 = vunpack.c.h.b16 %v138
  %v654 = vunpack.c.l.b16 %v139
  %v655 = vunpack.c.h.b16 %v139
  %v656 = vunpack.c.l.b16 %v140
  %v657 = vunpack.c.h.b16 %v140
  %v658 = vunpack.c.l.b16 %v141
  %v659 = vunpack.c.h.b16 %v141
  %v660 = vunpack.c.l.b16 %v142
  %v661 = vunpack.c.h.b16 %v142
  %v662 = vunpack.c.l.b16 %v143
  %v663 = vunpack.c.h.b16 %v143
  %v664 = vunpack.c.l.b16 %v144
  %v665 = vunpack.c.h.b16 %v144
  %v666 = vunpack.c.l.b16 %v145
  %v667 = vunpack.c.h.b16 %v145
  %v668 = vunpack.c.l.b16 %v146
  %v669 = vunpack.c.h.b16 %v146
  %v670 = vunpack.c.l.b16 %v147
  %v671 = vunpack.c.h.b16 %v147
  %v672 = vunpack.c.l.b16 %v148
  %v673 = vunpack.c.h.b16 %v148
  %v674 = vunpack.c.l.b16 %v149
  %v675 = vunpack.c.h.b16 %v149
  %v676 = vunpack.c.l.b16 %v150
  %v677 = vunpack.c.h.b16 %v150
  %v678 = vunpack.c.l.b16 %v151
  %v679 = vunpack.c.h.b16 %v151
  %v680 = vunpack.c.l.b16 %v152
  %v681 = vunpack.c.h.b16 %v152
  %v682 = vunpack.c.l.b16 %v153
  %v683 = vunpack.c.h.b16 %v153
  %v684 = vunpack.c.l.b16 %v154
  %v685 = vunpack.c.h.b16 %v154
  %v686 = vunpack.c.l.b16 %v155
  %v687 = vunpack.c.h.b16 %v155
  %v688 = vunpack.c.l.b16 %v156
  %v689 = vunpack.c.h.b16 %v156
  %v690 = vunpack.c.l.b16 %v157
  %v691 = vunpack.c.h.b16 %v157
  %v692 = vunpack.c.l.b16 %v158
  %v693 = vunpack.c.h.b16 %v158
  %v694 = vunpack.c.l.b16 %v159
  %v695 = vunpack.c.h.b16 %v159
  %v696 = vunpack.c.l.b16 %v160
  %v697 = vunpack.c.h.b16 %v160
  %v698 = vunpack.c.l.b16 %v161
  %v699 = vunpack.c.h.b16 %v161
  %v700 = vunpack.c.l.b16 %v162
  %v701 = vunpack.c.h.b16 %v162
  %v702 = vunpack.c.l.b16 %v163
  %v703 = vunpack.c.h.b16 %v163
  %v704 = vunpack.c.l.b16 %v164
  %v705 = vunpack.c.h.b16 %v164
  %v706 = vunpack.c.l.b16 %v165
  %v707 = vunpack.c.h.b16 %v165
  %v708 = vunpack.c.l.b16 %v166
  %v709 = vunpack.c.h.b16 %v166
  %v710 = vunpack.c.l.b16 %v167
  %v711 = vunpack.c.h.b16 %v167
  %v712 = vunpack.c.l.b16 %v168
  %v713 = vunpack.c.h.b16 %v168
  %v714 = vunpack.c.l.b16 %v169
  %v715 = vunpack.c.h.b16 %v169
  %v716 = vunpack.c.l.b16 %v170
  %v717 = vunpack.c.h.b16 %v170
  %v718 = vunpack.c.l.b16 %v171
  %v719 = vunpack.c.h.b16 %v171
  %v720 = vunpack.c.l.b16 %v172
  %v721 = vunpack.c.h.b16 %v172
  %v722 = vunpack.c.l.b16 %v173
  %v723 = vunpack.c.h.b16 %v173
  %v724 = vunpack.c.l.b16 %v174
  %v725 = vunpack.c.h.b16 %v174
  %v726 = vunpack.c.l.b16 %v175
  %v727 = vunpack.c.h.b16 %v175
  %v728 = vunpack.c.l.b16 %v176
  %v729 = vunpack.c.h.b16 %v176
  %v730 = vunpack.c.l.b16 %v177
  %v731 = vunpack.c.h.b16 %v177
  %v732 = vunpack.c.l.b16 %v178
  %v733 = vunpack.c.h.b16 %v178
  %v734 = vunpack.c.l.b16 %v179
  %v735 = vunpack.c.h.b16 %v179
  %v736 = vunpack.c.l.b16 %v180
  %v737 = vunpack.c.h.b16 %v180
  %v738 = vunpack.c.l.b16 %v181
  %v739 = vunpack.c.h.b16 %v181
  %v740 = vunpack.c.l.b16 %v182
  %v741 = vunpack.c.h.b16 %v182
  %v742 = vunpack.c.l.b16 %v183
  %v743 = vunpack.c.h.b16 %v183
  %v744 = vunpack.c.l.b16 %v184
  %v745 = vunpack.c.h.b16 %v184
  %v746 = vunpack.c.l.b16 %v185
  %v747 = vunpack.c.h.b16 %v185
  %v748 = vunpack.c.l.b16 %v186
  %v749 = vunpack.c.h.b16 %v186
  %v750 = vunpack.c.l.b16 %v187
  %v751 = vunpack.c.h.b16 %v187
  %v752 = vunpack.c.l.b16 %v188
  %v753 = vunpack.c.h.b16 %v188
  %v754 = vunpack.c.l.b16 %v189
  %v755 = vunpack.c.h.b16 %v189
  %v756 = vunpack.c.l.b16 %v190
  %v757 = vunpack.c.h.b16 %v190
  %v758 = vunpack.c.l.b16 %v191
  %v759 = vunpack.c.h.b16 %v191
  %v760 = vunpack.c.l.b16 %v192
  %v761 = vunpack.c.h.b16 %v192
  %v762 = vunpack.c.l.b16 %v193
  %v763 = vunpack.c.h.b16 %v193
  %v764 = vunpack.c.l.b16 %v194
  %v765 = vunpack.c.h.b16 %v194
  %v766 = vunpack.c.l.b16 %v195
  %v767 = vunpack.c.h.b16 %v195
  %v768 = vunpack.c.l.b16 %v196
  %v769 = vunpack.c.h.b16 %v196
  %v770 = vunpack.c.l.b16 %v197
  %v771 = vunpack.c.h.b16 %v197
  %v772 = vunpack.c.l.b16 %v198
  %v773 = vunpack.c.h.b16 %v198
  %v774 = vunpack.c.l.b16 %v199
  %v775 = vunpack.c.h.b16 %v199
  %v776 = vunpack.c.l.b16 %v200
  %v777 = vunpack.c.h.b16 %v200
  %v778 = vunpack.c.l.b16 %v201
  %v779 = vunpack.c.h.b16 %v201
  %v780 = vunpack.c.l.b16 %v202
  %v781 = vunpack.c.h.b16 %v202
  %v782 = vunpack.c.l.b16 %v203
  %v783 = vunpack.c.h.b16 %v203
  %v784 = vunpack.c.l.b16 %v204
  %v785 = vunpack.c.h.b16 %v204
  %v786 = vunpack.c.l.b16 %v205
  %v787 = vunpack.c.h.b16 %v205
  %v788 = vunpack.c.l.b16 %v206
  %v789 = vunpack.c.h.b16 %v206
  %v790 = vunpack.c.l.b16 %v207
  %v791 = vunpack.c.h.b16 %v207
  %v792 = vunpack.c.l.b16 %v208
  %v793 = vunpack.c.h.b16 %v208
  %v794 = vunpack.c.l.b16 %v209
  %v795 = vunpack.c.h.b16 %v209
  %v796 = vunpack.c.l.b16 %v210
  %v797 = vunpack.c.h.b16 %v210
  %v798 = vunpack.c.l.b16 %v211
  %v799 = vunpack.c.h.b16 %v211
  %v800 = vunpack.c.l.b16 %v212
  %v801 = vunpack.c.h.b16 %v212
  %v802 = vunpack.c.l.b16 %v213
  %v803 = vunpack.c.h.b16 %v213
  %v804 = vunpack.c.l.b16 %v214
  %v805 = vunpack.c.h.b16 %v214
  %v806 = vunpack.c.l.b16 %v215
  %v807 = vunpack.c.h.b16 %v215
  %v808 = vunpack.c.l.b16 %v216
  %v809 = vunpack.c.h.b16 %v216
  %v810 = vunpack.c.l.b16 %v217
  %v811 = vunpack.c.h.b16 %v217
  %v812 = vunpack.c.l.b16 %v218
  %v813 = vunpack.c.h.b16 %v218
  %v814 = vunpack.c.l.b16 %v219
  %v815 = vunpack.c.h.b16 %v219
  %v816 = vunpack.c.l.b16 %v220
  %v817 = vunpack.c.h.b16 %v220
  %v818 = vunpack.c.l.b16 %v221
  %v819 = vunpack.c.h.b16 %v221
  %v820 = vunpack.c.l.b16 %v222
  %v821 = vunpack.c.h.b16 %v222
  %v822 = vunpack.c.l.b16 %v223
  %v823 = vunpack.c.h.b16 %v223
  %v824 = vunpack.c.l.b16 %v224
  %v825 = vunpack.c.h.b16 %v224
  %v826 = vunpack.c.l.b16 %v225
  %v827 = vunpack.c.h.b16 %v225
  %v828 = vunpack.c.l.b16 %v226
  %v829 = vunpack.c.h.b16 %v226
  %v830 = vunpack.c.l.b16 %v227
  %v831 = vunpack.c.h.b16 %v227
  %v832 = vunpack.c.l.b16 %v228
  %v833 = vunpack.c.h.b16 %v228
  %v834 = vunpack.c.l.b16 %v229
  %v835 = vunpack.c.h.b16 %v229
  %v836 = vunpack.c.l.b16 %v230
  %v837 = vunpack.c.h.b16 %v230
  %v838 = vunpack.c.l.b16 %v231
  %v839 = vunpack.c.h.b16 %v231
  %v840 = vunpack.c.l.b16 %v232
  %v841 = vunpack.c.h.b16 %v232
  %v842 = vunpack.c.l.b16 %v233
  %v843 = vunpack.c.h.b16 %v233
  %v844 = vpack.c.b16 %v456, %v452
  %v845 = vpack.c.b16 %v457, %v453
  %v846 = vpack.c.b16 %v458, %v454
  %v847 = vpack.c.b16 %v459, %v455
  %v848 = vpack.c.b16 %v464, %v460
  %v849 = vpack.c.b16 %v465, %v461
  %v850 = vpack.c.b16 %v466, %v462
  %v851 = vpack.c.b16 %v467, %v463
  %v852 = vpack.c.b16 %v472, %v468
  %v853 = vpack.c.b16 %v473, %v469
  %v854 = vpack.c.b16 %v474, %v470
  %v855 = vpack.c.b16 %v475, %v471
  %v856 = vpack.c.b16 %v480, %v476
  %v857 = vpack.c.b16 %v481, %v477
  %v858 = vpack.c.b16 %v482, %v478
  %v859 = vpack.c.b16 %v483, %v479
  %v860 = vpack.c.b16 %v488, %v484
  %v861 = vpack.c.b16 %v489, %v485
  %v862 = vpack.c.b16 %v490, %v486
  %v863 = vpack.c.b16 %v491, %v487
  %v864 = vpack.c.b16 %v496, %v492
  %v865 = vpack.c.b16 %v497, %v493
  %v866 = vpack.c.b16 %v498, %v494
  %v867 = vpack.c.b16 %v499, %v495
  %v868 = vpack.c.b16 %v504, %v500
  %v869 = vpack.c.b16 %v505, %v501
  %v870 = vpack.c.b16 %v506, %v502
  %v871 = vpack.c.b16 %v507, %v503
  %v872 = vpack.c.b16 %v512, %v508
  %v873 = vpack.c.b16 %v513, %v509
  %v874 = vpack.c.b16 %v514, %v510
  %v875 = vpack.c.b16 %v515, %v511
  %v876 = vpack.c.b16 %v520, %v516
  %v877 = vpack.c.b16 %v521, %v517
  %v878 = vpack.c.b16 %v522, %v518
  %v879 = vpack.c.b16 %v523, %v519
  %v880 = vpack.c.b16 %v528, %v524
  %v881 = vpack.c.b16 %v529, %v525
  %v882 = vpack.c.b16 %v530, %v526
  %v883 = vpack.c.b16 %v531, %v527
  %v884 = vpack.c.b16 %v536, %v532
  %v885 = vpack.c.b16 %v537, %v533
  %v886 = vpack.c.b16 %v538, %v534
  %v887 = vpack.c.b16 %v539, %v535
  %v888 = vpack.c.b16 %v544, %v540
  %v889 = vpack.c.b16 %v545, %v541
  %v890 = vpack.c.b16 %v546, %v542
  %v891 = vpack.c.b16 %v547, %v543
  %v892 = vpack.c.b16 %v552, %v548
  %v893 = vpack.c.b16 %v553, %v549
  %v894 = vpack.c.b16 %v554, %v550
  %v895 = vpack.c.b16 %v555, %v551
  %v896 = vpack.c.b16 %v560, %v556
  %v897 = vpack.c.b16 %v561, %v557
  %v898 = vpack.c.b16 %v562, %v558
  %v899 = vpack.c.b16 %v563, %v559
  %v900 = vpack.c.b16 %v568, %v564
  %v901 = vpack.c.b16 %v569, %v565
  %v902 = vpack.c.b16 %v570, %v566
  %v903 = vpack.c.b16 %v571, %v567
  %v904 = vpack.c.b16 %v576, %v572
  %v905 = vpack.c.b16 %v577, %v573
  %v906 = vpack.c.b16 %v578, %v574
  %v907 = vpack.c.b16 %v579, %v575
  %v908 = vpack.c.b16 %v584, %v580
  %v909 = vpack.c.b16 %v585, %v581
  %v910 = vpack.c.b16 %v586, %v582
  %v911 = vpack.c.b16 %v587, %v583
  %v912 = vpack.c.b16 %v592, %v588
  %v913 = vpack.c.b16 %v593, %v589
  %v914 = vpack.c.b16 %v594, %v590
  %v915 = vpack.c.b16 %v595, %v591
  %v916 = vpack.c.b16 %v600, %v596
  %v917 = vpack.c.b16 %v601, %v597
  %v918 = vpack.c.b16 %v602, %v598
  %v919 = vpack.c.b16 %v603, %v599
  %v920 = vpack.c.b16 %v608, %v604
  %v921 = vpack.c.b16 %v609, %v605
  %v922 = vpack.c.b16 %v610, %v606
  %v923 = vpack.c.b16 %v611, %v607
  %v924 = vpack.c.b16 %v616, %v612
  %v925 = vpack.c.b16 %v617, %v613
  %v926 = vpack.c.b16 %v618, %v614
  %v927 = vpack.c.b16 %v619, %v615
  %v928 = vpack.c.b16 %v624, %v620
  %v929 = vpack.c.b16 %v625, %v621
  %v930 = vpack.c.b16 %v626, %v622
  %v931 = vpack.c.b16 %v627, %v623
  %v932 = vpack.c.b16 %v632, %v628
  %v933 = vpack.c.b16 %v633, %v629
  %v934 = vpack.c.b16 %v634, %v630
  %v935 = vpack.c.b16 %v635, %v631
  %v936 = vpack.c.b16 %v640, %v636
  %v937 = vpack.c.b16 %v641, %v637
  %v938 = vpack.c.b16 %v642, %v638
  %v939 = vpack.c.b16 %v643, %v639
  %v940 = vpack.c.b16 %v648, %v644
  %v941 = vpack.c.b16 %v649, %v645
  %v942 = vpack.c.b16 %v650, %v646
  %v943 = vpack.c.b16 %v651, %v647
  %v944 = vpack.c.b16 %v656, %v652
  %v945 = vpack.c.b16 %v657, %v653
  %v946 = vpack.c.b16 %v658, %v654
  %v947 = vpack.c.b16 %v659, %v655
  %v948 = vpack.c.b16 %v664, %v660
  %v949 = vpack.c.b16 %v665, %v661
  %v950 = vpack.c.b16 %v666, %v662
  %v951 = vpack.c.b16 %v667, %v663
  %v952 = vpack.c.b16 %v672, %v668
  %v953 = vpack.c.b16 %v673, %v669
  %v954 = vpack.c.b16 %v674, %v670
  %v955 = vpack.c.b16 %v675, %v671
  %v956 = vpack.c.b16 %v680, %v676
  %v957 = vpack.c.b16 %v681, %v677
  %v958 = vpack.c.b16 %v682, %v678
  %v959 = vpack.c.b16 %v683, %v679
  %v960 = vpack.c.b16 %v688, %v684
  %v961 = vpack.c.b16 %v689, %v685
  %v962 = vpack.c.b16 %v690, %v686
  %v963 = vpack.c.b16 %v691, %v687
  %v964 = vpack.c.b16 %v696, %v692
  %v965 = vpack.c.b16 %v697, %v693
  %v966 = vpack.c.b16 %v698, %v694
  %v967 = vpack.c.b16 %v699, %v695
  %v968 = vpack.c.b16 %v704, %v700
  %v969 = vpack.c.b16 %v705, %v701
  %v970 = vpack.c.b16 %v706, %v702
  %v971 = vpack.c.b16 %v707, %v703
  %v972 = vpack.c.b16 %v712, %v708
  %v973 = vpack.c.b16 %v713, %v709
  %v974 = vpack.c.b16 %v714, %v710
  %v975 = vpack.c.b16 %v715, %v711
  %v976 = vpack.c.b16 %v720, %v716
  %v977 = vpack.c.b16 %v721, %v717
  %v978 = vpack.c.b16 %v722, %v718
  %v979 = vpack.c.b16 %v723, %v719
  %v980 = vpack.c.b16 %v728, %v724
  %v981 = vpack.c.b16 %v729, %v725
  %v982 = vpack.c.b16 %v730, %v726
  %v983 = vpack.c.b16 %v731, %v727
  %v984 = vpack.c.b16 %v736, %v732
  %v985 = vpack.c.b16 %v737, %v733
  %v986 = vpack.c.b16 %v738, %v734
  %v987 = vpack.c.b16 %v739, %v735
  %v988 = vpack.c.b16 %v744, %v740
  %v989 = vpack.c.b16 %v745, %v741
  %v990 = vpack.c.b16 %v746, %v742
  %v991 = vpack.c.b16 %v747, %v743
  %v992 = vpack.c.b16 %v752, %v748
  %v993 = vpack.c.b16 %v753, %v749
  %v994 = vpack.c.b16 %v754, %v750
  %v995 = vpack.c.b16 %v755, %v751
  %v996 = vpack.c.b16 %v760, %v756
  %v997 = vpack.c.b16 %v761, %v757
  %v998 = vpack.c.b16 %v762, %v758
  %v999 = vpack.c.b16 %v763, %v759
  %v1000 = vpack.c.b16 %v768, %v764
  %v1001 = vpack.c.b16 %v769, %v765
  %v1002 = vpack.c.b16 %v770, %v766
  %v1003 = vpack.c.b16 %v771, %v767
  %v1004 = vpack.c.b16 %v776, %v772
  %v1005 = vpack.c.b16 %v777, %v773
  %v1006 = vpack.c.b16 %v778, %v774
  %v1007 = vpack.c.b16 %v779, %v775
  %v1008 = vpack.c.b16 %v784, %v780
  %v1009 = vpack.c.b16 %v785, %v781
  %v1010 = vpack.c.b16 %v786, %v782
  %v1011 = vpack.c.b16 %v787, %v783
  %v1012 = vpack.c.b16 %v792, %v788
  %v1013 = vpack.c.b16 %v793, %v789
  %v1014 = vpack.c.b16 %v794, %v790
  %v1015 = vpack.c.b16 %v795, %v791
  %v1016 = vpack.c.b16 %v800, %v796
  %v1017 = vpack.c.b16 %v801, %v797
  %v1018 = vpack.c.b16 %v802, %v798
  %v1019 = vpack.c.b16 %v803, %v799
  %v1020 = vpack.c.b16 %v808, %v804
  %v1021 = vpack.c.b16 %v809, %v805
  %v1022 = vpack.c.b16 %v810, %v806
  %v1023 = vpack.c.b16 %v811, %v807
  %v1024 = vpack.c.b16 %v816, %v812
  %v1025 = vpack.c.b16 %v817, %v813
  %v1026 = vpack.c.b16 %v818, %v814
  %v1027 = vpack.c.b16 %v819, %v815
  %v1028 = vpack.c.b16 %v824, %v820
  %v1029 = vpack.c.b16 %v825, %v821
  %v1030 = vpack.c.b16 %v826, %v822
  %v1031 = vpack.c.b16 %v827, %v823
  %v1032 = vpack.c.b16 %v832, %v828
  %v1033 = vpack.c.b16 %v833, %v829
  %v1034 = vpack.c.b16 %v834, %v830
  %v1035 = vpack.c.b16 %v835, %v831
  %v1036 = vpack.c.b16 %v840, %v836
  %v1037 = vpack.c.b16 %v841, %v837
  %v1038 = vpack.c.b16 %v842, %v838
  %v1039 = vpack.c.b16 %v843, %v839
  %vm1236 = vcmask 130048
  %v1238 = vsel %vm1236, %v37, 0
  %1240 = vmatprep.subr.bf16.mxu0 %v845
  %1241 = vmatpush1.bf16.msra.mxu0 %v844
  %1242 = vmatprep.subr.bf16.mxu0 %v849
  %1243 = vmatpush1.bf16.msra.mxu0 %v848
  %1244 = vmatprep.subr.bf16.mxu0 %v853
  %1245 = vmatpush1.bf16.msra.mxu0 %v852
  %1246 = vmatprep.subr.bf16.mxu0 %v857
  %1247 = vmatpush1.bf16.msra.mxu0 %v856
  %1248 = vmatprep.subr.bf16.mxu0 %v861
  %1249 = vmatpush1.bf16.msra.mxu0 %v860
  %1250 = vmatprep.subr.bf16.mxu0 %v865
  %1251 = vmatpush1.bf16.msra.mxu0 %v864
  %1252 = vmatprep.subr.bf16.mxu0 %v869
  %1253 = vmatpush1.bf16.msra.mxu0 %v868
  %1254 = vmatprep.subr.bf16.mxu0 %v873
  %1255 = vmatpush1.bf16.msra.mxu0 %v872
  %1256 = vmatprep.subr.bf16.mxu0 %v877
  %1257 = vmatpush1.bf16.msra.mxu0 %v876
  %1258 = vmatprep.subr.bf16.mxu0 %v881
  %1259 = vmatpush1.bf16.msra.mxu0 %v880
  %1260 = vmatprep.subr.bf16.mxu0 %v885
  %1261 = vmatpush1.bf16.msra.mxu0 %v884
  %1262 = vmatprep.subr.bf16.mxu0 %v889
  %1263 = vmatpush1.bf16.msra.mxu0 %v888
  %1264 = vmatprep.subr.bf16.mxu0 %v893
  %1265 = vmatpush1.bf16.msra.mxu0 %v892
  %1266 = vmatprep.subr.bf16.mxu0 %v897
  %1267 = vmatpush1.bf16.msra.mxu0 %v896
  %1268 = vmatprep.subr.bf16.mxu0 %v901
  %1269 = vmatpush1.bf16.msra.mxu0 %v900
  %1270 = vmatprep.subr.bf16.mxu0 %v905
  %1271 = vmatpush1.bf16.msra.mxu0 %v904
  %1272 = vmatprep.mubr.bf16.mxu0 %v32
  %1273 = vmatmul.mubr.bf16.gmra.mrb[0].mxu0 %v31
  %v1274 = vpop.f32.mrb[0].mxu0
  %v1275 = vadd.f32 %v239, %v1274
  %v1276 = vpop.f32.mrb[0].mxu0
  %v1277 = vadd.f32 %v243, %v1276
  %v1278 = vpop.f32.mrb[0].mxu0
  %v1279 = vpop.f32.mrb[0].mxu0
  %1280 = vdwg.mxu0
  %1281 = vmatprep.subr.bf16.mxu0 %v909
  %1282 = vmatpush1.bf16.msra.mxu0 %v908
  %1283 = vmatprep.subr.bf16.mxu0 %v913
  %1284 = vmatpush1.bf16.msra.mxu0 %v912
  %1285 = vmatprep.subr.bf16.mxu0 %v917
  %1286 = vmatpush1.bf16.msra.mxu0 %v916
  %1287 = vmatprep.subr.bf16.mxu0 %v921
  %1288 = vmatpush1.bf16.msra.mxu0 %v920
  %1289 = vmatprep.subr.bf16.mxu0 %v925
  %1290 = vmatpush1.bf16.msra.mxu0 %v924
  %1291 = vmatprep.subr.bf16.mxu0 %v929
  %1292 = vmatpush1.bf16.msra.mxu0 %v928
  %1293 = vmatprep.subr.bf16.mxu0 %v933
  %1294 = vmatpush1.bf16.msra.mxu0 %v932
  %1295 = vmatprep.subr.bf16.mxu0 %v937
  %1296 = vmatpush1.bf16.msra.mxu0 %v936
  %1297 = vmatprep.subr.bf16.mxu0 %v941
  %1298 = vmatpush1.bf16.msra.mxu0 %v940
  %1299 = vmatprep.subr.bf16.mxu0 %v945
  %1300 = vmatpush1.bf16.msra.mxu0 %v944
  %1301 = vmatprep.subr.bf16.mxu0 %v949
  %1302 = vmatpush1.bf16.msra.mxu0 %v948
  %1303 = vmatprep.subr.bf16.mxu0 %v953
  %1304 = vmatpush1.bf16.msra.mxu0 %v952
  %1305 = vmatprep.subr.bf16.mxu0 %v957
  %1306 = vmatpush1.bf16.msra.mxu0 %v956
  %1307 = vmatprep.subr.bf16.mxu0 %v961
  %1308 = vmatpush1.bf16.msra.mxu0 %v960
  %1309 = vmatprep.subr.bf16.mxu0 %v965
  %1310 = vmatpush1.bf16.msra.mxu0 %v964
  %1311 = vmatprep.subr.bf16.mxu0 %v969
  %1312 = vmatpush1.bf16.msra.mxu0 %v968
  %1313 = vmatprep.mubr.bf16.mxu0 %v34
  %1314 = vmatmul.mubr.bf16.gmra.mrb[0].mxu0 %v33
  %v1315 = vpop.f32.mrb[0].mxu0
  %v1316 = vadd.f32 %v1275, %v1315
  %v1317 = vpop.f32.mrb[0].mxu0
  %v1318 = vadd.f32 %v1277, %v1317
  %v1319 = vpop.f32.mrb[0].mxu0
  %v1320 = vpop.f32.mrb[0].mxu0
  %1321 = vdwg.mxu0
  %1322 = vmatprep.subr.bf16.mxu0 %v973
  %1323 = vmatpush1.bf16.msra.mxu0 %v972
  %1324 = vmatprep.subr.bf16.mxu0 %v977
  %1325 = vmatpush1.bf16.msra.mxu0 %v976
  %1326 = vmatprep.subr.bf16.mxu0 %v981
  %1327 = vmatpush1.bf16.msra.mxu0 %v980
  %1328 = vmatprep.subr.bf16.mxu0 %v985
  %1329 = vmatpush1.bf16.msra.mxu0 %v984
  %1330 = vmatprep.subr.bf16.mxu0 %v989
  %1331 = vmatpush1.bf16.msra.mxu0 %v988
  %1332 = vmatprep.subr.bf16.mxu0 %v993
  %1333 = vmatpush1.bf16.msra.mxu0 %v992
  %1334 = vmatprep.subr.bf16.mxu0 %v997
  %1335 = vmatpush1.bf16.msra.mxu0 %v996
  %1336 = vmatprep.subr.bf16.mxu0 %v1001
  %1337 = vmatpush1.bf16.msra.mxu0 %v1000
  %1338 = vmatprep.subr.bf16.mxu0 %v1005
  %1339 = vmatpush1.bf16.msra.mxu0 %v1004
  %1340 = vmatprep.subr.bf16.mxu0 %v1009
  %1341 = vmatpush1.bf16.msra.mxu0 %v1008
  %1342 = vmatprep.subr.bf16.mxu0 %v1013
  %1343 = vmatpush1.bf16.msra.mxu0 %v1012
  %1344 = vmatprep.subr.bf16.mxu0 %v1017
  %1345 = vmatpush1.bf16.msra.mxu0 %v1016
  %1346 = vmatprep.subr.bf16.mxu0 %v1021
  %1347 = vmatpush1.bf16.msra.mxu0 %v1020
  %1348 = vmatprep.subr.bf16.mxu0 %v1025
  %1349 = vmatpush1.bf16.msra.mxu0 %v1024
  %1350 = vmatprep.subr.bf16.mxu0 %v1029
  %1351 = vmatpush1.bf16.msra.mxu0 %v1028
  %1352 = vmatprep.subr.bf16.mxu0 %v1033
  %1353 = vmatpush1.bf16.msra.mxu0 %v1032
  %1354 = vmatprep.mubr.bf16.mxu0 %v36
  %1355 = vmatmul.mubr.bf16.gmra.mrb[0].mxu0 %v35
  %v1356 = vpop.f32.mrb[0].mxu0
  %v1357 = vadd.f32 %v1316, %v1356
  %v1358 = vpop.f32.mrb[0].mxu0
  %v1359 = vadd.f32 %v1318, %v1358
  %v1360 = vpop.f32.mrb[0].mxu0
  %v1361 = vpop.f32.mrb[0].mxu0
  %1362 = vdwg.mxu0
  %1363 = vmatprep.subr.bf16.mxu0 %v1037
  %1364 = vmatpush1.bf16.msra.mxu0 %v1036
  %1365 = vmatprep.subr.bf16.mxu0 0
  %1366 = vmatpush1.bf16.msra.mxu0 0
  %1367 = vmatprep.subr.bf16.mxu0 0
  %1368 = vmatpush1.bf16.msra.mxu0 0
  %1369 = vmatprep.subr.bf16.mxu0 0
  %1370 = vmatpush1.bf16.msra.mxu0 0
  %1371 = vmatprep.subr.bf16.mxu0 0
  %1372 = vmatpush1.bf16.msra.mxu0 0
  %1373 = vmatprep.subr.bf16.mxu0 0
  %1374 = vmatpush1.bf16.msra.mxu0 0
  %1375 = vmatprep.subr.bf16.mxu0 0
  %1376 = vmatpush1.bf16.msra.mxu0 0
  %1377 = vmatprep.subr.bf16.mxu0 0
  %1378 = vmatpush1.bf16.msra.mxu0 0
  %1379 = vmatprep.subr.bf16.mxu0 0
  %1380 = vmatpush1.bf16.msra.mxu0 0
  %1381 = vmatprep.subr.bf16.mxu0 0
  %1382 = vmatpush1.bf16.msra.mxu0 0
  %1383 = vmatprep.subr.bf16.mxu0 0
  %1384 = vmatpush1.bf16.msra.mxu0 0
  %1385 = vmatprep.subr.bf16.mxu0 0
  %1386 = vmatpush1.bf16.msra.mxu0 0
  %1387 = vmatprep.subr.bf16.mxu0 0
  %1388 = vmatpush1.bf16.msra.mxu0 0
  %1389 = vmatprep.subr.bf16.mxu0 0
  %1390 = vmatpush1.bf16.msra.mxu0 0
  %1391 = vmatprep.subr.bf16.mxu0 0
  %1392 = vmatpush1.bf16.msra.mxu0 0
  %1393 = vmatprep.subr.bf16.mxu0 0
  %1394 = vmatpush1.bf16.msra.mxu0 0
  %1395 = vmatprep.mubr.bf16.mxu0 0
  %1396 = vmatmul.mubr.bf16.gmra.mrb[0].mxu0 %v1238
  %v1397 = vpop.f32.mrb[0].mxu0
  %v1398 = vadd.f32 %v1357, %v1397
  %v1399 = vpop.f32.mrb[0].mxu0
  %v1400 = vadd.f32 %v1359, %v1399
  %v1401 = vpop.f32.mrb[0].mxu0
  %v1402 = vpop.f32.mrb[0].mxu0
  %1403 = vdwg.mxu0
  %1404 = vmatprep.subr.bf16.mxu0 %v847
  %1405 = vmatpush1.bf16.msra.mxu0 %v846
  %1406 = vmatprep.subr.bf16.mxu0 %v851
  %1407 = vmatpush1.bf16.msra.mxu0 %v850
  %1408 = vmatprep.subr.bf16.mxu0 %v855
  %1409 = vmatpush1.bf16.msra.mxu0 %v854
  %1410 = vmatprep.subr.bf16.mxu0 %v859
  %1411 = vmatpush1.bf16.msra.mxu0 %v858
  %1412 = vmatprep.subr.bf16.mxu0 %v863
  %1413 = vmatpush1.bf16.msra.mxu0 %v862
  %1414 = vmatprep.subr.bf16.mxu0 %v867
  %1415 = vmatpush1.bf16.msra.mxu0 %v866
  %1416 = vmatprep.subr.bf16.mxu0 %v871
  %1417 = vmatpush1.bf16.msra.mxu0 %v870
  %1418 = vmatprep.subr.bf16.mxu0 %v875
  %1419 = vmatpush1.bf16.msra.mxu0 %v874
  %1420 = vmatprep.subr.bf16.mxu0 %v879
  %1421 = vmatpush1.bf16.msra.mxu0 %v878
  %1422 = vmatprep.subr.bf16.mxu0 %v883
  %1423 = vmatpush1.bf16.msra.mxu0 %v882
  %1424 = vmatprep.subr.bf16.mxu0 %v887
  %1425 = vmatpush1.bf16.msra.mxu0 %v886
  %1426 = vmatprep.subr.bf16.mxu0 %v891
  %1427 = vmatpush1.bf16.msra.mxu0 %v890
  %1428 = vmatprep.subr.bf16.mxu0 %v895
  %1429 = vmatpush1.bf16.msra.mxu0 %v894
  %1430 = vmatprep.subr.bf16.mxu0 %v899
  %1431 = vmatpush1.bf16.msra.mxu0 %v898
  %1432 = vmatprep.subr.bf16.mxu0 %v903
  %1433 = vmatpush1.bf16.msra.mxu0 %v902
  %1434 = vmatprep.subr.bf16.mxu0 %v907
  %1435 = vmatpush1.bf16.msra.mxu0 %v906
  %1436 = vmatprep.mubr.bf16.mxu0 %v32
  %1437 = vmatmul.mubr.bf16.gmra.mrb[0].mxu0 %v31
  %v1438 = vpop.f32.mrb[0].mxu0
  %v1439 = vadd.f32 %v247, %v1438
  %v1440 = vpop.f32.mrb[0].mxu0
  %v1441 = vadd.f32 %v251, %v1440
  %v1442 = vpop.f32.mrb[0].mxu0
  %v1443 = vpop.f32.mrb[0].mxu0
  %1444 = vdwg.mxu0
  %1445 = vmatprep.subr.bf16.mxu0 %v911
  %1446 = vmatpush1.bf16.msra.mxu0 %v910
  %1447 = vmatprep.subr.bf16.mxu0 %v915
  %1448 = vmatpush1.bf16.msra.mxu0 %v914
  %1449 = vmatprep.subr.bf16.mxu0 %v919
  %1450 = vmatpush1.bf16.msra.mxu0 %v918
  %1451 = vmatprep.subr.bf16.mxu0 %v923
  %1452 = vmatpush1.bf16.msra.mxu0 %v922
  %1453 = vmatprep.subr.bf16.mxu0 %v927
  %1454 = vmatpush1.bf16.msra.mxu0 %v926
  %1455 = vmatprep.subr.bf16.mxu0 %v931
  %1456 = vmatpush1.bf16.msra.mxu0 %v930
  %1457 = vmatprep.subr.bf16.mxu0 %v935
  %1458 = vmatpush1.bf16.msra.mxu0 %v934
  %1459 = vmatprep.subr.bf16.mxu0 %v939
  %1460 = vmatpush1.bf16.msra.mxu0 %v938
  %1461 = vmatprep.subr.bf16.mxu0 %v943
  %1462 = vmatpush1.bf16.msra.mxu0 %v942
  %1463 = vmatprep.subr.bf16.mxu0 %v947
  %1464 = vmatpush1.bf16.msra.mxu0 %v946
  %1465 = vmatprep.subr.bf16.mxu0 %v951
  %1466 = vmatpush1.bf16.msra.mxu0 %v950
  %1467 = vmatprep.subr.bf16.mxu0 %v955
  %1468 = vmatpush1.bf16.msra.mxu0 %v954
  %1469 = vmatprep.subr.bf16.mxu0 %v959
  %1470 = vmatpush1.bf16.msra.mxu0 %v958
  %1471 = vmatprep.subr.bf16.mxu0 %v963
  %1472 = vmatpush1.bf16.msra.mxu0 %v962
  %1473 = vmatprep.subr.bf16.mxu0 %v967
  %1474 = vmatpush1.bf16.msra.mxu0 %v966
  %1475 = vmatprep.subr.bf16.mxu0 %v971
  %1476 = vmatpush1.bf16.msra.mxu0 %v970
  %1477 = vmatprep.mubr.bf16.mxu0 %v34
  %1478 = vmatmul.mubr.bf16.gmra.mrb[0].mxu0 %v33
  %v1479 = vpop.f32.mrb[0].mxu0
  %v1480 = vadd.f32 %v1439, %v1479
  %v1481 = vpop.f32.mrb[0].mxu0
  %v1482 = vadd.f32 %v1441, %v1481
  %v1483 = vpop.f32.mrb[0].mxu0
  %v1484 = vpop.f32.mrb[0].mxu0
  %1485 = vdwg.mxu0
  %1486 = vmatprep.subr.bf16.mxu0 %v975
  %1487 = vmatpush1.bf16.msra.mxu0 %v974
  %1488 = vmatprep.subr.bf16.mxu0 %v979
  %1489 = vmatpush1.bf16.msra.mxu0 %v978
  %1490 = vmatprep.subr.bf16.mxu0 %v983
  %1491 = vmatpush1.bf16.msra.mxu0 %v982
  %1492 = vmatprep.subr.bf16.mxu0 %v987
  %1493 = vmatpush1.bf16.msra.mxu0 %v986
  %1494 = vmatprep.subr.bf16.mxu0 %v991
  %1495 = vmatpush1.bf16.msra.mxu0 %v990
  %1496 = vmatprep.subr.bf16.mxu0 %v995
  %1497 = vmatpush1.bf16.msra.mxu0 %v994
  %1498 = vmatprep.subr.bf16.mxu0 %v999
  %1499 = vmatpush1.bf16.msra.mxu0 %v998
  %1500 = vmatprep.subr.bf16.mxu0 %v1003
  %1501 = vmatpush1.bf16.msra.mxu0 %v1002
  %1502 = vmatprep.subr.bf16.mxu0 %v1007
  %1503 = vmatpush1.bf16.msra.mxu0 %v1006
  %1504 = vmatprep.subr.bf16.mxu0 %v1011
  %1505 = vmatpush1.bf16.msra.mxu0 %v1010
  %1506 = vmatprep.subr.bf16.mxu0 %v1015
  %1507 = vmatpush1.bf16.msra.mxu0 %v1014
  %1508 = vmatprep.subr.bf16.mxu0 %v1019
  %1509 = vmatpush1.bf16.msra.mxu0 %v1018
  %1510 = vmatprep.subr.bf16.mxu0 %v1023
  %1511 = vmatpush1.bf16.msra.mxu0 %v1022
  %1512 = vmatprep.subr.bf16.mxu0 %v1027
  %1513 = vmatpush1.bf16.msra.mxu0 %v1026
  %1514 = vmatprep.subr.bf16.mxu0 %v1031
  %1515 = vmatpush1.bf16.msra.mxu0 %v1030
  %1516 = vmatprep.subr.bf16.mxu0 %v1035
  %1517 = vmatpush1.bf16.msra.mxu0 %v1034
  %1518 = vmatprep.mubr.bf16.mxu0 %v36
  %1519 = vmatmul.mubr.bf16.gmra.mrb[0].mxu0 %v35
  %v1520 = vpop.f32.mrb[0].mxu0
  %v1521 = vadd.f32 %v1480, %v1520
  %v1522 = vpop.f32.mrb[0].mxu0
  %v1523 = vadd.f32 %v1482, %v1522
  %v1524 = vpop.f32.mrb[0].mxu0
  %v1525 = vpop.f32.mrb[0].mxu0
  %1526 = vdwg.mxu0
  %1527 = vmatprep.subr.bf16.mxu0 %v1039
  %1528 = vmatpush1.bf16.msra.mxu0 %v1038
  %1529 = vmatprep.subr.bf16.mxu0 0
  %1530 = vmatpush1.bf16.msra.mxu0 0
  %1531 = vmatprep.subr.bf16.mxu0 0
  %1532 = vmatpush1.bf16.msra.mxu0 0
  %1533 = vmatprep.subr.bf16.mxu0 0
  %1534 = vmatpush1.bf16.msra.mxu0 0
  %1535 = vmatprep.subr.bf16.mxu0 0
  %1536 = vmatpush1.bf16.msra.mxu0 0
  %1537 = vmatprep.subr.bf16.mxu0 0
  %1538 = vmatpush1.bf16.msra.mxu0 0
  %1539 = vmatprep.subr.bf16.mxu0 0
  %1540 = vmatpush1.bf16.msra.mxu0 0
  %1541 = vmatprep.subr.bf16.mxu0 0
  %1542 = vmatpush1.bf16.msra.mxu0 0
  %1543 = vmatprep.subr.bf16.mxu0 0
  %1544 = vmatpush1.bf16.msra.mxu0 0
  %1545 = vmatprep.subr.bf16.mxu0 0
  %1546 = vmatpush1.bf16.msra.mxu0 0
  %1547 = vmatprep.subr.bf16.mxu0 0
  %1548 = vmatpush1.bf16.msra.mxu0 0
  %1549 = vmatprep.subr.bf16.mxu0 0
  %1550 = vmatpush1.bf16.msra.mxu0 0
  %1551 = vmatprep.subr.bf16.mxu0 0
  %1552 = vmatpush1.bf16.msra.mxu0 0
  %1553 = vmatprep.subr.bf16.mxu0 0
  %1554 = vmatpush1.bf16.msra.mxu0 0
  %1555 = vmatprep.subr.bf16.mxu0 0
  %1556 = vmatpush1.bf16.msra.mxu0 0
  %1557 = vmatprep.subr.bf16.mxu0 0
  %1558 = vmatpush1.bf16.msra.mxu0 0
  %1559 = vmatprep.mubr.bf16.mxu0 0
  %1560 = vmatmul.mubr.bf16.gmra.mrb[0].mxu0 %v1238
  %v1561 = vpop.f32.mrb[0].mxu0
  %v1562 = vadd.f32 %v1521, %v1561
  %v1563 = vpop.f32.mrb[0].mxu0
  %v1564 = vadd.f32 %v1523, %v1563
  %v1565 = vpop.f32.mrb[0].mxu0
  %v1566 = vpop.f32.mrb[0].mxu0
  %1567 = vdwg.mxu0
  %v1568 = vmax.f32 %v1398, 0.0
  %v1569 = vmax.f32 %v1400, 0.0
  %v1570 = vmax.f32 %v1562, 0.0
  %v1571 = vmax.f32 %v1564, 0.0
  %v1572 = vpack.c.bf16 %v1568, %v1568
  %v1573 = vpack.c.bf16 %v1569, %v1569
  %v1574 = vpack.c.bf16 %v1570, %v1570
  %v1575 = vpack.c.bf16 %v1571, %v1571
  %v1576 = vld [vmem:[%s3] sm:$0xff]
  %v1577 = vld [vmem:[%s3 + $0x8] sm:$0xff]
  %v1578 = vld [vmem:[%s3 + $0x10] sm:$0xff]
  %v1579 = vld [vmem:[%s3 + $0x18] sm:$0xff]
  %v1580 = vld [vmem:[%s3 + $0x20] sm:$0xff]
  %v1581 = vld [vmem:[%s3 + $0x28] sm:$0xff]
  %v1582 = vld [vmem:[%s3 + $0x30] sm:$0xff]
  %v1583 = vld [vmem:[%s3 + $0x38] sm:$0xff]
  %v1584 = vld [vmem:[%s3 + $0x40] sm:$0xff]
  %v1585 = vld [vmem:[%s3 + $0x48] sm:$0xff]
  %v1586 = vld [vmem:[%s3 + $0x50] sm:$0xff]
  %v1587 = vld [vmem:[%s3 + $0x58] sm:$0xff]
  %v1588 = vld [vmem:[%s3 + $0x60] sm:$0xff]
  %v1589 = vld [vmem:[%s3 + $0x68] sm:$0xff]
  %v1590 = vld [vmem:[%s3 + $0x70] sm:$0xff]
  %v1591 = vld [vmem:[%s3 + $0x78] sm:$0xff]
  %v1592 = vld [vmem:[%s3 + $0x80] sm:$0xff]
  %v1593 = vld [vmem:[%s3 + $0x88] sm:$0xff]
  %v1594 = vld [vmem:[%s3 + $0x90] sm:$0xff]
  %v1595 = vld [vmem:[%s3 + $0x98] sm:$0xff]
  %v1596 = vld [vmem:[%s3 + $0xa0] sm:$0xff]
  %v1597 = vld [vmem:[%s3 + $0xa8] sm:$0xff]
  %v1598 = vld [vmem:[%s3 + $0xb0] sm:$0xff]
  %v1599 = vld [vmem:[%s3 + $0xb8] sm:$0xff]
  %v1600 = vld [vmem:[%s3 + $0xc0] sm:$0xff]
  %v1601 = vld [vmem:[%s3 + $0xc8] sm:$0xff]
  %v1602 = vld [vmem:[%s3 + $0xd0] sm:$0xff]
  %v1603 = vld [vmem:[%s3 + $0xd8] sm:$0xff]
  %v1604 = vld [vmem:[%s3 + $0xe0] sm:$0xff]
  %v1605 = vld [vmem:[%s3 + $0xe8] sm:$0xff]
  %v1606 = vld [vmem:[%s3 + $0xf0] sm:$0xff]
  %v1607 = vld [vmem:[%s3 + $0xf8] sm:$0xff]
  %v1608 = vld [vmem:[%s3 + $0x100] sm:$0xff]
  %v1609 = vld [vmem:[%s3 + $0x108] sm:$0xff]
  %v1610 = vld [vmem:[%s3 + $0x110] sm:$0xff]
  %v1611 = vld [vmem:[%s3 + $0x118] sm:$0xff]
  %v1612 = vld [vmem:[%s3 + $0x120] sm:$0xff]
  %v1613 = vld [vmem:[%s3 + $0x128] sm:$0xff]
  %v1614 = vld [vmem:[%s3 + $0x130] sm:$0xff]
  %v1615 = vld [vmem:[%s3 + $0x138] sm:$0xff]
  %v1616 = vld [vmem:[%s3 + $0x140] sm:$0xff]
  %v1617 = vld [vmem:[%s3 + $0x148] sm:$0xff]
  %v1618 = vld [vmem:[%s3 + $0x150] sm:$0xff]
  %v1619 = vld [vmem:[%s3 + $0x158] sm:$0xff]
  %v1620 = vld [vmem:[%s3 + $0x160] sm:$0xff]
  %v1621 = vld [vmem:[%s3 + $0x168] sm:$0xff]
  %v1622 = vld [vmem:[%s3 + $0x170] sm:$0xff]
  %v1623 = vld [vmem:[%s3 + $0x178] sm:$0xff]
  %v1624 = vld [vmem:[%s3 + $0x180] sm:$0xff]
  %v1625 = vld [vmem:[%s3 + $0x188] sm:$0xff]
  %v1626 = vld [vmem:[%s3 + $0x190] sm:$0xff]
  %v1627 = vld [vmem:[%s3 + $0x198] sm:$0xff]
  %v1628 = vld [vmem:[%s3 + $0x1a0] sm:$0xff]
  %v1629 = vld [vmem:[%s3 + $0x1a8] sm:$0xff]
  %v1630 = vld [vmem:[%s3 + $0x1b0] sm:$0xff]
  %v1631 = vld [vmem:[%s3 + $0x1b8] sm:$0xff]
  %v1632 = vld [vmem:[%s3 + $0x1c0] sm:$0xff]
  %v1633 = vld [vmem:[%s3 + $0x1c8] sm:$0xff]
  %v1634 = vld [vmem:[%s3 + $0x1d0] sm:$0xff]
  %v1635 = vld [vmem:[%s3 + $0x1d8] sm:$0xff]
  %v1636 = vld [vmem:[%s3 + $0x1e0] sm:$0xff]
  %v1637 = vld [vmem:[%s3 + $0x1e8] sm:$0xff]
  %v1638 = vld [vmem:[%s3 + $0x1f0] sm:$0xff]
  %v1639 = vld [vmem:[%s3 + $0x1f8] sm:$0xff]
  %v1640 = vld [vmem:[%s4] sm:$0x3]
  %v1642 = vlaneseq
  %v1643 = vshrl.u32 %v1642, 7
  %v1644 = vsub.s32 0, %v1643
  %v1645 = vrot.slane %v1640, %v1644
  %v1646 = vlaneseq
  %v1647 = vshrl.u32 %v1646, 7
  %v1648 = vsub.s32 1, %v1647
  %v1649 = vrot.slane %v1640, %v1648
  %v1716 = vunpack.c.l.b16 %v1576
  %v1717 = vunpack.c.h.b16 %v1576
  %v1718 = vunpack.c.l.b16 %v1577
  %v1719 = vunpack.c.h.b16 %v1577
  %v1720 = vunpack.c.l.b16 %v1578
  %v1721 = vunpack.c.h.b16 %v1578
  %v1722 = vunpack.c.l.b16 %v1579
  %v1723 = vunpack.c.h.b16 %v1579
  %v1724 = vunpack.c.l.b16 %v1580
  %v1725 = vunpack.c.h.b16 %v1580
  %v1726 = vunpack.c.l.b16 %v1581
  %v1727 = vunpack.c.h.b16 %v1581
  %v1728 = vunpack.c.l.b16 %v1582
  %v1729 = vunpack.c.h.b16 %v1582
  %v1730 = vunpack.c.l.b16 %v1583
  %v1731 = vunpack.c.h.b16 %v1583
  %v1732 = vunpack.c.l.b16 %v1584
  %v1733 = vunpack.c.h.b16 %v1584
  %v1734 = vunpack.c.l.b16 %v1585
  %v1735 = vunpack.c.h.b16 %v1585
  %v1736 = vunpack.c.l.b16 %v1586
  %v1737 = vunpack.c.h.b16 %v1586
  %v1738 = vunpack.c.l.b16 %v1587
  %v1739 = vunpack.c.h.b16 %v1587
  %v1740 = vunpack.c.l.b16 %v1588
  %v1741 = vunpack.c.h.b16 %v1588
  %v1742 = vunpack.c.l.b16 %v1589
  %v1743 = vunpack.c.h.b16 %v1589
  %v1744 = vunpack.c.l.b16 %v1590
  %v1745 = vunpack.c.h.b16 %v1590
  %v1746 = vunpack.c.l.b16 %v1591
  %v1747 = vunpack.c.h.b16 %v1591
  %v1748 = vunpack.c.l.b16 %v1592
  %v1749 = vunpack.c.h.b16 %v1592
  %v1750 = vunpack.c.l.b16 %v1593
  %v1751 = vunpack.c.h.b16 %v1593
  %v1752 = vunpack.c.l.b16 %v1594
  %v1753 = vunpack.c.h.b16 %v1594
  %v1754 = vunpack.c.l.b16 %v1595
  %v1755 = vunpack.c.h.b16 %v1595
  %v1756 = vunpack.c.l.b16 %v1596
  %v1757 = vunpack.c.h.b16 %v1596
  %v1758 = vunpack.c.l.b16 %v1597
  %v1759 = vunpack.c.h.b16 %v1597
  %v1760 = vunpack.c.l.b16 %v1598
  %v1761 = vunpack.c.h.b16 %v1598
  %v1762 = vunpack.c.l.b16 %v1599
  %v1763 = vunpack.c.h.b16 %v1599
  %v1764 = vunpack.c.l.b16 %v1600
  %v1765 = vunpack.c.h.b16 %v1600
  %v1766 = vunpack.c.l.b16 %v1601
  %v1767 = vunpack.c.h.b16 %v1601
  %v1768 = vunpack.c.l.b16 %v1602
  %v1769 = vunpack.c.h.b16 %v1602
  %v1770 = vunpack.c.l.b16 %v1603
  %v1771 = vunpack.c.h.b16 %v1603
  %v1772 = vunpack.c.l.b16 %v1604
  %v1773 = vunpack.c.h.b16 %v1604
  %v1774 = vunpack.c.l.b16 %v1605
  %v1775 = vunpack.c.h.b16 %v1605
  %v1776 = vunpack.c.l.b16 %v1606
  %v1777 = vunpack.c.h.b16 %v1606
  %v1778 = vunpack.c.l.b16 %v1607
  %v1779 = vunpack.c.h.b16 %v1607
  %v1780 = vunpack.c.l.b16 %v1608
  %v1781 = vunpack.c.h.b16 %v1608
  %v1782 = vunpack.c.l.b16 %v1609
  %v1783 = vunpack.c.h.b16 %v1609
  %v1784 = vunpack.c.l.b16 %v1610
  %v1785 = vunpack.c.h.b16 %v1610
  %v1786 = vunpack.c.l.b16 %v1611
  %v1787 = vunpack.c.h.b16 %v1611
  %v1788 = vunpack.c.l.b16 %v1612
  %v1789 = vunpack.c.h.b16 %v1612
  %v1790 = vunpack.c.l.b16 %v1613
  %v1791 = vunpack.c.h.b16 %v1613
  %v1792 = vunpack.c.l.b16 %v1614
  %v1793 = vunpack.c.h.b16 %v1614
  %v1794 = vunpack.c.l.b16 %v1615
  %v1795 = vunpack.c.h.b16 %v1615
  %v1796 = vunpack.c.l.b16 %v1616
  %v1797 = vunpack.c.h.b16 %v1616
  %v1798 = vunpack.c.l.b16 %v1617
  %v1799 = vunpack.c.h.b16 %v1617
  %v1800 = vunpack.c.l.b16 %v1618
  %v1801 = vunpack.c.h.b16 %v1618
  %v1802 = vunpack.c.l.b16 %v1619
  %v1803 = vunpack.c.h.b16 %v1619
  %v1804 = vunpack.c.l.b16 %v1620
  %v1805 = vunpack.c.h.b16 %v1620
  %v1806 = vunpack.c.l.b16 %v1621
  %v1807 = vunpack.c.h.b16 %v1621
  %v1808 = vunpack.c.l.b16 %v1622
  %v1809 = vunpack.c.h.b16 %v1622
  %v1810 = vunpack.c.l.b16 %v1623
  %v1811 = vunpack.c.h.b16 %v1623
  %v1812 = vunpack.c.l.b16 %v1624
  %v1813 = vunpack.c.h.b16 %v1624
  %v1814 = vunpack.c.l.b16 %v1625
  %v1815 = vunpack.c.h.b16 %v1625
  %v1816 = vunpack.c.l.b16 %v1626
  %v1817 = vunpack.c.h.b16 %v1626
  %v1818 = vunpack.c.l.b16 %v1627
  %v1819 = vunpack.c.h.b16 %v1627
  %v1820 = vunpack.c.l.b16 %v1628
  %v1821 = vunpack.c.h.b16 %v1628
  %v1822 = vunpack.c.l.b16 %v1629
  %v1823 = vunpack.c.h.b16 %v1629
  %v1824 = vunpack.c.l.b16 %v1630
  %v1825 = vunpack.c.h.b16 %v1630
  %v1826 = vunpack.c.l.b16 %v1631
  %v1827 = vunpack.c.h.b16 %v1631
  %v1828 = vunpack.c.l.b16 %v1632
  %v1829 = vunpack.c.h.b16 %v1632
  %v1830 = vunpack.c.l.b16 %v1633
  %v1831 = vunpack.c.h.b16 %v1633
  %v1832 = vunpack.c.l.b16 %v1634
  %v1833 = vunpack.c.h.b16 %v1634
  %v1834 = vunpack.c.l.b16 %v1635
  %v1835 = vunpack.c.h.b16 %v1635
  %v1836 = vunpack.c.l.b16 %v1636
  %v1837 = vunpack.c.h.b16 %v1636
  %v1838 = vunpack.c.l.b16 %v1637
  %v1839 = vunpack.c.h.b16 %v1637
  %v1840 = vunpack.c.l.b16 %v1638
  %v1841 = vunpack.c.h.b16 %v1638
  %v1842 = vunpack.c.l.b16 %v1639
  %v1843 = vunpack.c.h.b16 %v1639
  %v1844 = vpack.c.b16 %v1718, %v1716
  %v1845 = vpack.c.b16 %v1719, %v1717
  %v1846 = vpack.c.b16 %v1722, %v1720
  %v1847 = vpack.c.b16 %v1723, %v1721
  %v1848 = vpack.c.b16 %v1726, %v1724
  %v1849 = vpack.c.b16 %v1727, %v1725
  %v1850 = vpack.c.b16 %v1730, %v1728
  %v1851 = vpack.c.b16 %v1731, %v1729
  %v1852 = vpack.c.b16 %v1734, %v1732
  %v1853 = vpack.c.b16 %v1735, %v1733
  %v1854 = vpack.c.b16 %v1738, %v1736
  %v1855 = vpack.c.b16 %v1739, %v1737
  %v1856 = vpack.c.b16 %v1742, %v1740
  %v1857 = vpack.c.b16 %v1743, %v1741
  %v1858 = vpack.c.b16 %v1746, %v1744
  %v1859 = vpack.c.b16 %v1747, %v1745
  %v1860 = vpack.c.b16 %v1750, %v1748
  %v1861 = vpack.c.b16 %v1751, %v1749
  %v1862 = vpack.c.b16 %v1754, %v1752
  %v1863 = vpack.c.b16 %v1755, %v1753
  %v1864 = vpack.c.b16 %v1758, %v1756
  %v1865 = vpack.c.b16 %v1759, %v1757
  %v1866 = vpack.c.b16 %v1762, %v1760
  %v1867 = vpack.c.b16 %v1763, %v1761
  %v1868 = vpack.c.b16 %v1766, %v1764
  %v1869 = vpack.c.b16 %v1767, %v1765
  %v1870 = vpack.c.b16 %v1770, %v1768
  %v1871 = vpack.c.b16 %v1771, %v1769
  %v1872 = vpack.c.b16 %v1774, %v1772
  %v1873 = vpack.c.b16 %v1775, %v1773
  %v1874 = vpack.c.b16 %v1778, %v1776
  %v1875 = vpack.c.b16 %v1779, %v1777
  %v1876 = vpack.c.b16 %v1782, %v1780
  %v1877 = vpack.c.b16 %v1783, %v1781
  %v1878 = vpack.c.b16 %v1786, %v1784
  %v1879 = vpack.c.b16 %v1787, %v1785
  %v1880 = vpack.c.b16 %v1790, %v1788
  %v1881 = vpack.c.b16 %v1791, %v1789
  %v1882 = vpack.c.b16 %v1794, %v1792
  %v1883 = vpack.c.b16 %v1795, %v1793
  %v1884 = vpack.c.b16 %v1798, %v1796
  %v1885 = vpack.c.b16 %v1799, %v1797
  %v1886 = vpack.c.b16 %v1802, %v1800
  %v1887 = vpack.c.b16 %v1803, %v1801
  %v1888 = vpack.c.b16 %v1806, %v1804
  %v1889 = vpack.c.b16 %v1807, %v1805
  %v1890 = vpack.c.b16 %v1810, %v1808
  %v1891 = vpack.c.b16 %v1811, %v1809
  %v1892 = vpack.c.b16 %v1814, %v1812
  %v1893 = vpack.c.b16 %v1815, %v1813
  %v1894 = vpack.c.b16 %v1818, %v1816
  %v1895 = vpack.c.b16 %v1819, %v1817
  %v1896 = vpack.c.b16 %v1822, %v1820
  %v1897 = vpack.c.b16 %v1823, %v1821
  %v1898 = vpack.c.b16 %v1826, %v1824
  %v1899 = vpack.c.b16 %v1827, %v1825
  %v1900 = vpack.c.b16 %v1830, %v1828
  %v1901 = vpack.c.b16 %v1831, %v1829
  %v1902 = vpack.c.b16 %v1834, %v1832
  %v1903 = vpack.c.b16 %v1835, %v1833
  %v1904 = vpack.c.b16 %v1838, %v1836
  %v1905 = vpack.c.b16 %v1839, %v1837
  %v1906 = vpack.c.b16 %v1842, %v1840
  %v1907 = vpack.c.b16 %v1843, %v1841
  %1972 = vmatprep.subr.bf16.mxu0 %v1845
  %1973 = vmatpush1.bf16.msra.mxu0 %v1844
  %1974 = vmatprep.subr.bf16.mxu0 %v1847
  %1975 = vmatpush1.bf16.msra.mxu0 %v1846
  %1976 = vmatprep.subr.bf16.mxu0 %v1849
  %1977 = vmatpush1.bf16.msra.mxu0 %v1848
  %1978 = vmatprep.subr.bf16.mxu0 %v1851
  %1979 = vmatpush1.bf16.msra.mxu0 %v1850
  %1980 = vmatprep.subr.bf16.mxu0 %v1853
  %1981 = vmatpush1.bf16.msra.mxu0 %v1852
  %1982 = vmatprep.subr.bf16.mxu0 %v1855
  %1983 = vmatpush1.bf16.msra.mxu0 %v1854
  %1984 = vmatprep.subr.bf16.mxu0 %v1857
  %1985 = vmatpush1.bf16.msra.mxu0 %v1856
  %1986 = vmatprep.subr.bf16.mxu0 %v1859
  %1987 = vmatpush1.bf16.msra.mxu0 %v1858
  %1988 = vmatprep.subr.bf16.mxu0 %v1861
  %1989 = vmatpush1.bf16.msra.mxu0 %v1860
  %1990 = vmatprep.subr.bf16.mxu0 %v1863
  %1991 = vmatpush1.bf16.msra.mxu0 %v1862
  %1992 = vmatprep.subr.bf16.mxu0 %v1865
  %1993 = vmatpush1.bf16.msra.mxu0 %v1864
  %1994 = vmatprep.subr.bf16.mxu0 %v1867
  %1995 = vmatpush1.bf16.msra.mxu0 %v1866
  %1996 = vmatprep.subr.bf16.mxu0 %v1869
  %1997 = vmatpush1.bf16.msra.mxu0 %v1868
  %1998 = vmatprep.subr.bf16.mxu0 %v1871
  %1999 = vmatpush1.bf16.msra.mxu0 %v1870
  %2000 = vmatprep.subr.bf16.mxu0 %v1873
  %2001 = vmatpush1.bf16.msra.mxu0 %v1872
  %2002 = vmatprep.subr.bf16.mxu0 %v1875
  %2003 = vmatpush1.bf16.msra.mxu0 %v1874
  %2004 = vmatprep.mubr.bf16.mxu0 %v1573
  %2005 = vmatmul.mubr.bf16.gmra.mrb[0].mxu0 %v1572
  %v2006 = vpop.f32.mrb[0].mxu0
  %v2007 = vadd.f32 %v1645, %v2006
  %v2008 = vpop.f32.mrb[0].mxu0
  %v2009 = vadd.f32 %v1649, %v2008
  %v2010 = vpop.f32.mrb[0].mxu0
  %v2011 = vpop.f32.mrb[0].mxu0
  %2012 = vdwg.mxu0
  %2013 = vmatprep.subr.bf16.mxu0 %v1877
  %2014 = vmatpush1.bf16.msra.mxu0 %v1876
  %2015 = vmatprep.subr.bf16.mxu0 %v1879
  %2016 = vmatpush1.bf16.msra.mxu0 %v1878
  %2017 = vmatprep.subr.bf16.mxu0 %v1881
  %2018 = vmatpush1.bf16.msra.mxu0 %v1880
  %2019 = vmatprep.subr.bf16.mxu0 %v1883
  %2020 = vmatpush1.bf16.msra.mxu0 %v1882
  %2021 = vmatprep.subr.bf16.mxu0 %v1885
  %2022 = vmatpush1.bf16.msra.mxu0 %v1884
  %2023 = vmatprep.subr.bf16.mxu0 %v1887
  %2024 = vmatpush1.bf16.msra.mxu0 %v1886
  %2025 = vmatprep.subr.bf16.mxu0 %v1889
  %2026 = vmatpush1.bf16.msra.mxu0 %v1888
  %2027 = vmatprep.subr.bf16.mxu0 %v1891
  %2028 = vmatpush1.bf16.msra.mxu0 %v1890
  %2029 = vmatprep.subr.bf16.mxu0 %v1893
  %2030 = vmatpush1.bf16.msra.mxu0 %v1892
  %2031 = vmatprep.subr.bf16.mxu0 %v1895
  %2032 = vmatpush1.bf16.msra.mxu0 %v1894
  %2033 = vmatprep.subr.bf16.mxu0 %v1897
  %2034 = vmatpush1.bf16.msra.mxu0 %v1896
  %2035 = vmatprep.subr.bf16.mxu0 %v1899
  %2036 = vmatpush1.bf16.msra.mxu0 %v1898
  %2037 = vmatprep.subr.bf16.mxu0 %v1901
  %2038 = vmatpush1.bf16.msra.mxu0 %v1900
  %2039 = vmatprep.subr.bf16.mxu0 %v1903
  %2040 = vmatpush1.bf16.msra.mxu0 %v1902
  %2041 = vmatprep.subr.bf16.mxu0 %v1905
  %2042 = vmatpush1.bf16.msra.mxu0 %v1904
  %2043 = vmatprep.subr.bf16.mxu0 %v1907
  %2044 = vmatpush1.bf16.msra.mxu0 %v1906
  %2045 = vmatprep.mubr.bf16.mxu0 %v1575
  %2046 = vmatmul.mubr.bf16.gmra.mrb[0].mxu0 %v1574
  %v2047 = vpop.f32.mrb[0].mxu0
  %v2048 = vadd.f32 %v2007, %v2047
  %v2049 = vpop.f32.mrb[0].mxu0
  %v2050 = vadd.f32 %v2009, %v2049
  %v2051 = vpop.f32.mrb[0].mxu0
  %v2052 = vpop.f32.mrb[0].mxu0
  %2053 = vdwg.mxu0
  %v2054 = vmul.f32 %v2050, 1.442695
  %v2055 = vpow.pop %v2054
  %v2056 = vld [vmem:[%s5] sm:$0xff]
  %v2057 = vmul.f32 %v2056, %v2055
  %v2058 = vadd.f32 %v2048, %v2057
  %v2059 = vlaneseq
  %v2060 = vand.u32 %v2059, 127
  %vm2061 = vcmp.lt.s32.totalorder %v2060, 2
  %v2062 = vmul.f32 %v2055, %v2055
  %v2063 = vmul.f32 %v2048, %v2048
  %v2064 = vadd.f32 %v2062, %v2063
  %v2065 = vsub.f32 %v2064, %v2050
  %v2066 = vsub.f32 %v2065, 0.5
  %v2067 = vsel %vm2061, %v2066, 0.0
  %2068 = vadd.xlane.f32.xlu0 %v2067
  %v2069 = vpop.xlane.xlu0 %2068
  %vm2070 = vcmp.eq.s32.totalorder %v2060, 2
  %v2071 = vsel %vm2070, %v2069, %v2058
  %2072 = vst [vmem:[%s6] sm:$0xff] %v2071
  // Predicated region
  $region26: #{vae_encoder.1} parent=0 // pred_check
    _
  $region27: #{vae_encoder.1} parent=0 // pred_check_branch
    %2074 = sbr.rel (0) target = $region29
  $region28: #{vae_encoder.1} parent=0 // pred_region
    _
  $region29: #{vae_encoder.1} parent=0 // pred_fallthru
    _
  // Predicated region
  $region30: #{vae_encoder.1} parent=0 // pred_check
    _
  $region31: #{vae_encoder.1} parent=0 // pred_check_branch
    %2076 = sbr.rel (0) target = $region33
  $region32: #{vae_encoder.1} parent=0 // pred_region
    _
  $region33: #{vae_encoder.1} parent=0 // pred_fallthru
    _

</llo_original>
